<compile_context>
chip_gen: v7x
topology: tpu7x:2x2x1
jax: 0.10.0
libtpu: 0.0.40
codegen_flags: <defaults>
</compile_context>

<pallas_src>
import jax
import jax.numpy as jnp
from jax.experimental import pallas as pl
from jax.experimental.pallas import tpu as pltpu

# ---- module hyperparameters (state_dim from env.observation_space, action_dim
#      from len(action_list); hidden_dims is a free constructor arg -> 128) ----
STATE_DIM = 5
ACTION_DIM = 2
HIDDEN = 128          # hidden_dims = (128, 128)
H_PAD = 128           # lane width for hidden layers and the padded output head

# ---- packed parameter slab layout (rows; bf16 => align weight blocks to 16) ----
W1_OFF = 0                      # rows [0, 5)    : W1  (STATE_DIM, HIDDEN)
B1_ROW = W1_OFF + STATE_DIM     # row 5          : b1
W2_OFF = 16                     # rows [16, 144) : W2  (HIDDEN, HIDDEN)
B2_ROW = W2_OFF + HIDDEN        # row 144        : b2
WO_OFF = 160                    # rows [160, 288): Wo  (HIDDEN, ACTION_DIM pad->128)
BO_ROW = WO_OFF + HIDDEN        # row 288        : bo  (padded to 128)
PRELU_ROW = BO_ROW + 1          # row 289        : shared PReLU slope, replicated
TOTAL_ROWS = 304                # padded to a multiple of 16

DEFAULT_TB = 512                # batch tile (rows) -> large enough for HBM roofline


def qvaluenet_kernel(x_ref, p_ref, o_ref):
    # x_ref : (TB, STATE_DIM) bf16   -- streamed batch tile
    # p_ref : (TOTAL_ROWS, H_PAD) bf16 -- resident packed params
    # o_ref : (TB, H_PAD) f32        -- lane-dense (padded) Q-values
    a = p_ref[PRELU_ROW:PRELU_ROW + 1, :].astype(jnp.float32)   # (1,128), all cols equal

    x = x_ref[...]                                              # bf16

    # layer 1: Linear + shared PReLU (bias add / PReLU in f32)
    h = jnp.dot(x, p_ref[W1_OFF:W1_OFF + STATE_DIM, :],
                preferred_element_type=jnp.float32)
    h = h + p_ref[B1_ROW:B1_ROW + 1, :].astype(jnp.float32)
    h = jnp.where(h > 0, h, a * h)

    # layer 2: Linear + shared PReLU
    h = jnp.dot(h.astype(jnp.bfloat16), p_ref[W2_OFF:W2_OFF + HIDDEN, :],
                preferred_element_type=jnp.float32)
    h = h + p_ref[B2_ROW:B2_ROW + 1, :].astype(jnp.float32)
    h = jnp.where(h > 0, h, a * h)

    # output head (columns >= ACTION_DIM are zero-padded in the slab)
    o = jnp.dot(h.astype(jnp.bfloat16), p_ref[WO_OFF:WO_OFF + HIDDEN, :],
                preferred_element_type=jnp.float32)
    o_ref[...] = o + p_ref[BO_ROW:BO_ROW + 1, :].astype(jnp.float32)


def qvaluenet_forward(x, param_slab, *, tb=DEFAULT_TB):
    """x: (B, STATE_DIM) float -> (B, ACTION_DIM) f32."""
    B = x.shape[0]
    nb = pl.cdiv(B, tb)
    b_pad = nb * tb

    x_bf = x.astype(jnp.bfloat16)
    if b_pad != B:
        x_bf = jnp.pad(x_bf, ((0, b_pad - B), (0, 0)))

    out = pl.pallas_call(
        qvaluenet_kernel,
        out_shape=jax.ShapeDtypeStruct((b_pad, H_PAD), jnp.float32),
        grid_spec=pltpu.PrefetchScalarGridSpec(
            num_scalar_prefetch=0,
            grid=(nb,),
            in_specs=[
                pl.BlockSpec((tb, STATE_DIM), lambda i: (i, 0)),          # stream x
                pl.BlockSpec((TOTAL_ROWS, H_PAD), lambda i: (0, 0)),      # resident params
            ],
            out_specs=pl.BlockSpec((tb, H_PAD), lambda i: (i, 0)),
        ),
        compiler_params=pltpu.CompilerParams(
            dimension_semantics=("parallel",),   # batch tiles split across v7x's 2 TCs
        ),
    )(x_bf, param_slab)

    return out[:B, :ACTION_DIM]


def init_params(key):
    """PyTorch-default init (Linear: U(+-1/sqrt(fan_in)); PReLU slope 0.25, shared),
    packed into a single bf16 slab."""
    def linear(k, fan_in, fan_out):
        kw, kb = jax.random.split(k)
        bound = 1.0 / jnp.sqrt(jnp.float32(fan_in))
        w = jax.random.uniform(kw, (fan_in, fan_out), jnp.float32, -bound, bound)
        b = jax.random.uniform(kb, (fan_out,), jnp.float32, -bound, bound)
        return w, b

    k1, k2, k3 = jax.random.split(key, 3)
    w1, b1 = linear(k1, STATE_DIM, HIDDEN)
    w2, b2 = linear(k2, HIDDEN, HIDDEN)
    wo, bo = linear(k3, HIDDEN, ACTION_DIM)
    prelu_a = jnp.float32(0.25)

    slab = jnp.zeros((TOTAL_ROWS, H_PAD), jnp.float32)
    slab = slab.at[W1_OFF:W1_OFF + STATE_DIM, :HIDDEN].set(w1)
    slab = slab.at[B1_ROW, :HIDDEN].set(b1)
    slab = slab.at[W2_OFF:W2_OFF + HIDDEN, :HIDDEN].set(w2)
    slab = slab.at[B2_ROW, :HIDDEN].set(b2)
    slab = slab.at[WO_OFF:WO_OFF + HIDDEN, :ACTION_DIM].set(wo)
    slab = slab.at[BO_ROW, :ACTION_DIM].set(bo)
    slab = slab.at[PRELU_ROW, :].set(prelu_a)
    return slab.astype(jnp.bfloat16)


def reference_forward(x, param_slab):
    """Pure-JAX reference with the identical bf16-operand / f32-accumulate recipe."""
    s32 = param_slab.astype(jnp.float32)
    a = s32[PRELU_ROW, 0]

    h = jnp.dot(x.astype(jnp.bfloat16), param_slab[W1_OFF:W1_OFF + STATE_DIM, :],
                preferred_element_type=jnp.float32) + s32[B1_ROW, :]
    h = jnp.where(h > 0, h, a * h)

    h = jnp.dot(h.astype(jnp.bfloat16), param_slab[W2_OFF:W2_OFF + HIDDEN, :],
                preferred_element_type=jnp.float32) + s32[B2_ROW, :]
    h = jnp.where(h > 0, h, a * h)

    o = jnp.dot(h.astype(jnp.bfloat16), param_slab[WO_OFF:WO_OFF + HIDDEN, :],
                preferred_element_type=jnp.float32) + s32[BO_ROW, :]
    return o[:, :ACTION_DIM]


if __name__ == "__main__":
    key = jax.random.PRNGKey(0)
    kx, kp = jax.random.split(key)

    BATCH = 2048  # realistic replay-buffer batch; 4 grid steps at TB=512
    x = jax.random.normal(kx, (BATCH, STATE_DIM), dtype=jnp.float32)
    param_slab = init_params(kp)

    out = qvaluenet_forward(x, param_slab)
    out = jax.block_until_ready(out)

    ref = reference_forward(x, param_slab)
    assert out.shape == (BATCH, ACTION_DIM)
    assert jnp.allclose(out, ref, atol=1e-2, rtol=1e-2), (
        float(jnp.max(jnp.abs(out - ref))))

    print("KERNEL_OK")
</pallas_src>

<mosaic_0001>
module attributes {stable_mosaic.version = 11 : i64} {
  func.func @qvaluenet_kernel(%arg0: i32, %arg1: memref<512x5xbf16, #tpu.memory_space<vmem>>, %arg2: memref<304x128xbf16, #tpu.memory_space<vmem>>, %arg3: memref<512x128xf32, #tpu.memory_space<vmem>>) attributes {dimension_semantics = [#tpu.dimension_semantics<parallel>], iteration_bounds = array<i64: 4>, scalar_prefetch = 0 : i64, scratch_operands = 0 : i64, tpu.core_type = #tpu.core_type<tc>, window_params = [{transform_indices = @transform_0, window_bounds = array<i64: 512, 5>}, {pipeline_mode = #tpu.pipeline_mode<synchronous>, transform_indices = @transform_1, window_bounds = array<i64: 304, 128>}, {transform_indices = @transform_2, window_bounds = array<i64: 512, 128>}]} {
    %c289 = arith.constant 289 : index
    %c0 = arith.constant 0 : index
    %0 = vector.load %arg2[%c289, %c0] : memref<304x128xbf16, #tpu.memory_space<vmem>>, vector<1x128xbf16>
    %1 = arith.extf %0 : vector<1x128xbf16> to vector<1x128xf32>
    %c0_0 = arith.constant 0 : index
    %c0_1 = arith.constant 0 : index
    %2 = vector.load %arg1[%c0_0, %c0_1] : memref<512x5xbf16, #tpu.memory_space<vmem>>, vector<512x5xbf16>
    %c0_2 = arith.constant 0 : index
    %c0_3 = arith.constant 0 : index
    %3 = vector.load %arg2[%c0_2, %c0_3] : memref<304x128xbf16, #tpu.memory_space<vmem>>, vector<5x128xbf16>
    %cst = arith.constant dense<0.000000e+00> : vector<512x128xf32>
    %4 = tpu.matmul %2, %3, %cst {dimension_numbers = #tpu.dot_dimension_numbers<[1], [0], [0], [1], [0, 0, 1, 1], [], []>} : vector<512x5xbf16>, vector<5x128xbf16>, vector<512x128xf32> -> vector<512x128xf32>
    %c5 = arith.constant 5 : index
    %c0_4 = arith.constant 0 : index
    %5 = vector.load %arg2[%c5, %c0_4] : memref<304x128xbf16, #tpu.memory_space<vmem>>, vector<1x128xbf16>
    %6 = arith.extf %5 : vector<1x128xbf16> to vector<1x128xf32>
    %7 = vector.broadcast %6 : vector<1x128xf32> to vector<512x128xf32>
    %8 = arith.addf %4, %7 : vector<512x128xf32>
    %cst_5 = arith.constant 0.000000e+00 : f32
    %9 = vector.broadcast %cst_5 : f32 to vector<512x128xf32>
    %10 = arith.cmpf ogt, %8, %9 : vector<512x128xf32>
    %11 = vector.broadcast %1 : vector<1x128xf32> to vector<512x128xf32>
    %12 = arith.mulf %11, %8 : vector<512x128xf32>
    %13 = arith.select %10, %8, %12 : vector<512x128xi1>, vector<512x128xf32>
    %14 = arith.truncf %13 : vector<512x128xf32> to vector<512x128xbf16>
    %c16 = arith.constant 16 : index
    %c0_6 = arith.constant 0 : index
    %15 = vector.load %arg2[%c16, %c0_6] : memref<304x128xbf16, #tpu.memory_space<vmem>>, vector<128x128xbf16>
    %cst_7 = arith.constant dense<0.000000e+00> : vector<512x128xf32>
    %16 = tpu.matmul %14, %15, %cst_7 {dimension_numbers = #tpu.dot_dimension_numbers<[1], [0], [0], [1], [0, 0, 1, 1], [], []>} : vector<512x128xbf16>, vector<128x128xbf16>, vector<512x128xf32> -> vector<512x128xf32>
    %c144 = arith.constant 144 : index
    %c0_8 = arith.constant 0 : index
    %17 = vector.load %arg2[%c144, %c0_8] : memref<304x128xbf16, #tpu.memory_space<vmem>>, vector<1x128xbf16>
    %18 = arith.extf %17 : vector<1x128xbf16> to vector<1x128xf32>
    %19 = vector.broadcast %18 : vector<1x128xf32> to vector<512x128xf32>
    %20 = arith.addf %16, %19 : vector<512x128xf32>
    %cst_9 = arith.constant 0.000000e+00 : f32
    %21 = vector.broadcast %cst_9 : f32 to vector<512x128xf32>
    %22 = arith.cmpf ogt, %20, %21 : vector<512x128xf32>
    %23 = vector.broadcast %1 : vector<1x128xf32> to vector<512x128xf32>
    %24 = arith.mulf %23, %20 : vector<512x128xf32>
    %25 = arith.select %22, %20, %24 : vector<512x128xi1>, vector<512x128xf32>
    %26 = arith.truncf %25 : vector<512x128xf32> to vector<512x128xbf16>
    %c160 = arith.constant 160 : index
    %c0_10 = arith.constant 0 : index
    %27 = vector.load %arg2[%c160, %c0_10] : memref<304x128xbf16, #tpu.memory_space<vmem>>, vector<128x128xbf16>
    %cst_11 = arith.constant dense<0.000000e+00> : vector<512x128xf32>
    %28 = tpu.matmul %26, %27, %cst_11 {dimension_numbers = #tpu.dot_dimension_numbers<[1], [0], [0], [1], [0, 0, 1, 1], [], []>} : vector<512x128xbf16>, vector<128x128xbf16>, vector<512x128xf32> -> vector<512x128xf32>
    %c288 = arith.constant 288 : index
    %c0_12 = arith.constant 0 : index
    %29 = vector.load %arg2[%c288, %c0_12] : memref<304x128xbf16, #tpu.memory_space<vmem>>, vector<1x128xbf16>
    %30 = arith.extf %29 : vector<1x128xbf16> to vector<1x128xf32>
    %31 = vector.broadcast %30 : vector<1x128xf32> to vector<512x128xf32>
    %32 = arith.addf %28, %31 : vector<512x128xf32>
    %c0_13 = arith.constant 0 : index
    %c0_14 = arith.constant 0 : index
    %33 = vector.load %arg3[%c0_13, %c0_14] : memref<512x128xf32, #tpu.memory_space<vmem>>, vector<512x128xf32>
    tpu.vector_store %arg3[%c0_13, %c0_14], %32 {strides = array<i32>} : memref<512x128xf32, #tpu.memory_space<vmem>>, vector<512x128xf32>,
    return
  }
  func.func @transform_0(%arg0: i32) -> (i32, i32) {
    %c0_i32 = arith.constant 0 : i32
    %c0_i32_0 = arith.constant 0 : i32
    return %arg0, %c0_i32 : i32, i32
  }
  func.func @transform_1(%arg0: i32) -> (i32, i32) {
    %c0_i32 = arith.constant 0 : i32
    %c0_i32_0 = arith.constant 0 : i32
    %c0_i32_1 = arith.constant 0 : i32
    return %c0_i32, %c0_i32_0 : i32, i32
  }
  func.func @transform_2(%arg0: i32) -> (i32, i32) {
    %c0_i32 = arith.constant 0 : i32
    %c0_i32_0 = arith.constant 0 : i32
    return %arg0, %c0_i32 : i32, i32
  }
}

</mosaic_0001>

<llo_original>
// kernel: tpu_custom_call.1
$region0: #{tpu_custom_call.1}
  #allocation0 [shape = 'u32[]', space=smem, size = 0x4, offset = 0x4, fixed_abs, tag = 'smem constant byte address 0x4 - core index']
  #allocation1 [shape = 'u32[144,128]{1,0:T(1,128)}', space=vmem, size = 0x12000, scoped, tag = 'internal scratch']
  %s0 = inlined_call_operand.vmem [shape: bf16[2048,5], index: 0, kind: input, shape index: {}]
  %s1 = inlined_call_operand.vmem [shape: bf16[304,128], index: 1, kind: input, shape index: {}]
  %s2 = inlined_call_operand.hbm [shape: f32[2048,128], index: 2, kind: output, shape index: {}]
  %s3 = sld [smem:[#allocation0]]
  $region41: #{tpu_custom_call.1} parent=0
    _
  %s5 = ssub.s32 1, %s3
  %s6 = scalar_select 0, %s5, %s3
  $region1: #{tpu_custom_call.1} parent=0
    #allocation2 [shape = 'u8[524288]{0}', space=vmem, size = 0x80000, scoped, tag = 'output window, operand 0']
    #allocation3 [shape = 's32[2]{0}', space=sflag, size = 0x8, scoped, tag = 'scoped memory for tpu_custom_call.1']
    %7 = vsyncpa [#allocation3], 0
    %s8 = scalar_lea.sflag [#allocation3], 1
    %9 = vsyncpa %s8, 0
    loop: start=0, step=1, limit=6
    $region2: #{tpu_custom_call.1} parent=1 // loop_pre_header
      _
    $region3: #{tpu_custom_call.1} parent=1 // loop_header
      %s11 = sphi 0, %s15
      %p12 = scmp.ge.s32.totalorder %s11, 6
      %s21 = sphi 0, %s23
      %s24 = sphi 0, %s21
      %s25 = sphi 0, %s24
      %s41 = sphi 0, %s25
      %s45 = sphi 0, %s45
      %s47 = sphi 0, %s45
      %s48 = sphi 0, %s47
      %s62 = sphi 0, %s48
      %s68 = sphi 0, %s70
      %s71 = sphi 0, %s68
      %s72 = sphi 0, %s71
      %s88 = sphi 0, %s72
    $region4: #{tpu_custom_call.1} parent=1 // loop_header_branch
      %14 = sbr.rel (%p12) target = $region8
    $region5: #{tpu_custom_call.1} parent=1 // loop_body
      %s16 = ssub.s32 %s11, 1
      %s17 = ssub.s32 %s11, 2
      %s18 = sadd.s32 %s11, 1
      %s19 = ssub.s32 %s11, %s18
      %p20 = scmp.eq.s32.totalorder %s19, 0
      %s22 = sadd.s32 %s21, 1
      %s23 = scalar_select %p20, %s21, %s22
      %p26 = pneg %p20
      %p27 = scmp.eq.s32.totalorder %s11, 3
      %p28 = por %p26, %p27
      %p29 = scmp.ne.s32.totalorder %s21, %s24
      %p30 = scmp.eq.s32.totalorder %s11, 0
      %p31 = por %p29, %p30
      %p32 = scmp.ne.s32.totalorder %s21, %s24
      %p33 = scmp.eq.s32.totalorder %s16, 3
      %p34 = por %p32, %p33
      %p35 = scmp.ne.s32.totalorder %s24, %s25
      %p36 = scmp.eq.s32.totalorder %s16, 0
      %p37 = por %p35, %p36
      %p38 = scmp.ne.s32.totalorder %s24, %s25
      %p39 = scmp.eq.s32.totalorder %s17, 3
      %p40 = por %p38, %p39
      %p42 = scmp.ne.s32.totalorder %s25, %s41
      %p43 = scmp.eq.s32.totalorder %s17, 0
      %p44 = por %p42, %p43
      %s46 = sadd.s32 %s45, 1
      %p49 = scmp.eq.s32.totalorder %s11, 3
      %p50 = scmp.ne.s32.totalorder %s45, %s47
      %p51 = scmp.eq.s32.totalorder %s11, 0
      %p52 = por %p50, %p51
      %p53 = scmp.ne.s32.totalorder %s45, %s47
      %p54 = scmp.eq.s32.totalorder %s16, 3
      %p55 = por %p53, %p54
      %p56 = scmp.ne.s32.totalorder %s47, %s48
      %p57 = scmp.eq.s32.totalorder %s16, 0
      %p58 = por %p56, %p57
      %p59 = scmp.ne.s32.totalorder %s47, %s48
      %p60 = scmp.eq.s32.totalorder %s17, 3
      %p61 = por %p59, %p60
      %p63 = scmp.ne.s32.totalorder %s48, %s62
      %p64 = scmp.eq.s32.totalorder %s17, 0
      %p65 = por %p63, %p64
      %s66 = ssub.s32 %s11, %s18
      %p67 = scmp.eq.s32.totalorder %s66, 0
      %s69 = sadd.s32 %s68, 1
      %s70 = scalar_select %p67, %s68, %s69
      %p73 = pneg %p67
      %p74 = scmp.eq.s32.totalorder %s11, 3
      %p75 = por %p73, %p74
      %p76 = scmp.ne.s32.totalorder %s68, %s71
      %p77 = scmp.eq.s32.totalorder %s11, 0
      %p78 = por %p76, %p77
      %p79 = scmp.ne.s32.totalorder %s68, %s71
      %p80 = scmp.eq.s32.totalorder %s16, 3
      %p81 = por %p79, %p80
      %p82 = scmp.ne.s32.totalorder %s71, %s72
      %p83 = scmp.eq.s32.totalorder %s16, 0
      %p84 = por %p82, %p83
      %p85 = scmp.ne.s32.totalorder %s71, %s72
      %p86 = scmp.eq.s32.totalorder %s17, 3
      %p87 = por %p85, %p86
      %p89 = scmp.ne.s32.totalorder %s72, %s88
      %p90 = scmp.eq.s32.totalorder %s17, 0
      %p91 = por %p89, %p90
      %p92 = scmp.le.s32.totalorder 1, %s11
      %p93 = scmp.lt.s32.totalorder %s11, 5
      %p94 = pnand %p92, %p93
      %p95 = pneg %p94
      // Predicated region
      $region9: #{tpu_custom_call.1} parent=5 // pred_check
        _
      $region10: #{tpu_custom_call.1} parent=5 // pred_check_branch
        %97 = sbr.rel (%p94) target = $region12
      $region11: #{tpu_custom_call.1} parent=5 // pred_region
        %s98 = ssub.s32 %s11, 1
        // Predicated region
        $region13: #{tpu_custom_call.1} parent=11 // pred_check
          %p99 = pneg %p58
        $region14: #{tpu_custom_call.1} parent=11 // pred_check_branch
          %101 = sbr.rel (%p99) target = $region16
        $region15: #{tpu_custom_call.1} parent=11 // pred_region
          _
        $region16: #{tpu_custom_call.1} parent=11 // pred_fallthru
          _
      $region12: #{tpu_custom_call.1} parent=5 // pred_fallthru
        _
      %p102 = scmp.lt.s32.totalorder %s11, 4
      // Predicated region
      $region17: #{tpu_custom_call.1} parent=5 // pred_check
        %p103 = pneg %p102
      $region18: #{tpu_custom_call.1} parent=5 // pred_check_branch
        %105 = sbr.rel (%p103) target = $region20
      $region19: #{tpu_custom_call.1} parent=5 // pred_region
        // Predicated region
        $region21: #{tpu_custom_call.1} parent=19 // pred_check
          %p106 = pneg %p31
        $region22: #{tpu_custom_call.1} parent=19 // pred_check_branch
          %108 = sbr.rel (%p106) target = $region24
        $region23: #{tpu_custom_call.1} parent=19 // pred_region
          %s109 = smul.u32 64, %s11
          %p110 = scmp.lt.s32.totalorder %s109, 255
          %s111 = scalar_select %p110, %s109, 255
          %s112 = smul.addr %s111, 4
          %s113 = scalar_lea.vmem %s0, %s112
          %s114 = smul.u32 64, %s11
        $region24: #{tpu_custom_call.1} parent=19 // pred_fallthru
          _
      $region20: #{tpu_custom_call.1} parent=5 // pred_fallthru
        _
      %p115 = scmp.le.s32.totalorder 1, %s11
      %p116 = scmp.lt.s32.totalorder %s11, 5
      %p117 = pnand %p115, %p116
      %p118 = pneg %p117
      // Predicated region
      $region25: #{tpu_custom_call.1} parent=5 // pred_check
        _
      $region26: #{tpu_custom_call.1} parent=5 // pred_check_branch
        %120 = sbr.rel (%p117) target = $region28
      $region27: #{tpu_custom_call.1} parent=5 // pred_region
        %s121 = ssub.s32 %s11, 1
        %s122 = smul.u32 64, %s16
        %p123 = scmp.lt.s32.totalorder %s122, 255
        %s124 = scalar_select %p123, %s122, 255
        %s125 = smul.addr %s124, 4
        %s126 = scalar_lea.vmem %s0, %s125
        %p127 = pneg %p37
        %p128 = pneg %p34
        %p129 = pneg %p58
        %p130 = pneg %p55
        %p131 = pneg %p84
        %p132 = pneg %p81
        %s133 = sand.u32 %s71, 1
        %s134 = scalar_lea.sflag [#allocation3], %s133
        %s135 = sand.u32 %s71, 1
        %s136 = smul.addr %s135, 512
        %s137 = scalar_lea.vmem [#allocation2], %s136
        %s138 = smul.u32 64, %s16
        %p139 = scmp.lt.s32.totalorder %s138, 255
        %s140 = scalar_select %p139, %s138, 255
        %s141 = smul.addr %s140, 4
        %s142 = scalar_lea.vmem %s0, %s141
        %s143 = smul.u32 64, %s16
        %s144 = smul.u32 64, %s16
        %v146 = vld [vmem:[%s1 + $0x90] sm:$0x1]
        %v147 = vunpack.c.l.bf16 %v146
        %v148 = vld [vmem:[%s142] sm:$0xf]
        %v149 = vld [vmem:[%s142 + $0x4] sm:$0xf]
        %v150 = vld [vmem:[%s142 + $0x8] sm:$0xf]
        %v151 = vld [vmem:[%s142 + $0xc] sm:$0xf]
        %v152 = vld [vmem:[%s142 + $0x10] sm:$0xf]
        %v153 = vld [vmem:[%s142 + $0x14] sm:$0xf]
        %v154 = vld [vmem:[%s142 + $0x18] sm:$0xf]
        %v155 = vld [vmem:[%s142 + $0x1c] sm:$0xf]
        %v156 = vld [vmem:[%s142 + $0x20] sm:$0xf]
        %v157 = vld [vmem:[%s142 + $0x24] sm:$0xf]
        %v158 = vld [vmem:[%s142 + $0x28] sm:$0xf]
        %v159 = vld [vmem:[%s142 + $0x2c] sm:$0xf]
        %v160 = vld [vmem:[%s142 + $0x30] sm:$0xf]
        %v161 = vld [vmem:[%s142 + $0x34] sm:$0xf]
        %v162 = vld [vmem:[%s142 + $0x38] sm:$0xf]
        %v163 = vld [vmem:[%s142 + $0x3c] sm:$0xf]
        %v164 = vld [vmem:[%s142 + $0x40] sm:$0xf]
        %v165 = vld [vmem:[%s142 + $0x44] sm:$0xf]
        %v166 = vld [vmem:[%s142 + $0x48] sm:$0xf]
        %v167 = vld [vmem:[%s142 + $0x4c] sm:$0xf]
        %v168 = vld [vmem:[%s142 + $0x50] sm:$0xf]
        %v169 = vld [vmem:[%s142 + $0x54] sm:$0xf]
        %v170 = vld [vmem:[%s142 + $0x58] sm:$0xf]
        %v171 = vld [vmem:[%s142 + $0x5c] sm:$0xf]
        %v172 = vld [vmem:[%s142 + $0x60] sm:$0xf]
        %v173 = vld [vmem:[%s142 + $0x64] sm:$0xf]
        %v174 = vld [vmem:[%s142 + $0x68] sm:$0xf]
        %v175 = vld [vmem:[%s142 + $0x6c] sm:$0xf]
        %v176 = vld [vmem:[%s142 + $0x70] sm:$0xf]
        %v177 = vld [vmem:[%s142 + $0x74] sm:$0xf]
        %v178 = vld [vmem:[%s142 + $0x78] sm:$0xf]
        %v179 = vld [vmem:[%s142 + $0x7c] sm:$0xf]
        %v180 = vld [vmem:[%s142 + $0x80] sm:$0xf]
        %v181 = vld [vmem:[%s142 + $0x84] sm:$0xf]
        %v182 = vld [vmem:[%s142 + $0x88] sm:$0xf]
        %v183 = vld [vmem:[%s142 + $0x8c] sm:$0xf]
        %v184 = vld [vmem:[%s142 + $0x90] sm:$0xf]
        %v185 = vld [vmem:[%s142 + $0x94] sm:$0xf]
        %v186 = vld [vmem:[%s142 + $0x98] sm:$0xf]
        %v187 = vld [vmem:[%s142 + $0x9c] sm:$0xf]
        %v188 = vld [vmem:[%s142 + $0xa0] sm:$0xf]
        %v189 = vld [vmem:[%s142 + $0xa4] sm:$0xf]
        %v190 = vld [vmem:[%s142 + $0xa8] sm:$0xf]
        %v191 = vld [vmem:[%s142 + $0xac] sm:$0xf]
        %v192 = vld [vmem:[%s142 + $0xb0] sm:$0xf]
        %v193 = vld [vmem:[%s142 + $0xb4] sm:$0xf]
        %v194 = vld [vmem:[%s142 + $0xb8] sm:$0xf]
        %v195 = vld [vmem:[%s142 + $0xbc] sm:$0xf]
        %v196 = vld [vmem:[%s142 + $0xc0] sm:$0xf]
        %v197 = vld [vmem:[%s142 + $0xc4] sm:$0xf]
        %v198 = vld [vmem:[%s142 + $0xc8] sm:$0xf]
        %v199 = vld [vmem:[%s142 + $0xcc] sm:$0xf]
        %v200 = vld [vmem:[%s142 + $0xd0] sm:$0xf]
        %v201 = vld [vmem:[%s142 + $0xd4] sm:$0xf]
        %v202 = vld [vmem:[%s142 + $0xd8] sm:$0xf]
        %v203 = vld [vmem:[%s142 + $0xdc] sm:$0xf]
        %v204 = vld [vmem:[%s142 + $0xe0] sm:$0xf]
        %v205 = vld [vmem:[%s142 + $0xe4] sm:$0xf]
        %v206 = vld [vmem:[%s142 + $0xe8] sm:$0xf]
        %v207 = vld [vmem:[%s142 + $0xec] sm:$0xf]
        %v208 = vld [vmem:[%s142 + $0xf0] sm:$0xf]
        %v209 = vld [vmem:[%s142 + $0xf4] sm:$0xf]
        %v210 = vld [vmem:[%s142 + $0xf8] sm:$0xf]
        %v211 = vld [vmem:[%s142 + $0xfc] sm:$0xf]
        %v212 = vld [vmem:[%s1] sm:$0x7]
        %v213 = vld [vmem:[%s1] sm:$0x4]
        %v214 = vunpack.c.l.bf16 %v213
        %v215 = vlaneseq
        %v216 = vshrl.u32 %v215, 7
        %v217 = vsub.s32 5, %v216
        %v218 = vrot.slane %v214, %v217
        %v283 = vunpack.c.l.b16 %v148
        %v284 = vunpack.c.l.b16 %v149
        %v285 = vunpack.c.l.b16 %v150
        %v286 = vunpack.c.l.b16 %v151
        %v287 = vunpack.c.l.b16 %v152
        %v288 = vunpack.c.l.b16 %v153
        %v289 = vunpack.c.l.b16 %v154
        %v290 = vunpack.c.l.b16 %v155
        %v291 = vunpack.c.l.b16 %v156
        %v292 = vunpack.c.l.b16 %v157
        %v293 = vunpack.c.l.b16 %v158
        %v294 = vunpack.c.l.b16 %v159
        %v295 = vunpack.c.l.b16 %v160
        %v296 = vunpack.c.l.b16 %v161
        %v297 = vunpack.c.l.b16 %v162
        %v298 = vunpack.c.l.b16 %v163
        %v299 = vunpack.c.l.b16 %v164
        %v300 = vunpack.c.l.b16 %v165
        %v301 = vunpack.c.l.b16 %v166
        %v302 = vunpack.c.l.b16 %v167
        %v303 = vunpack.c.l.b16 %v168
        %v304 = vunpack.c.l.b16 %v169
        %v305 = vunpack.c.l.b16 %v170
        %v306 = vunpack.c.l.b16 %v171
        %v307 = vunpack.c.l.b16 %v172
        %v308 = vunpack.c.l.b16 %v173
        %v309 = vunpack.c.l.b16 %v174
        %v310 = vunpack.c.l.b16 %v175
        %v311 = vunpack.c.l.b16 %v176
        %v312 = vunpack.c.l.b16 %v177
        %v313 = vunpack.c.l.b16 %v178
        %v314 = vunpack.c.l.b16 %v179
        %v315 = vunpack.c.l.b16 %v180
        %v316 = vunpack.c.l.b16 %v181
        %v317 = vunpack.c.l.b16 %v182
        %v318 = vunpack.c.l.b16 %v183
        %v319 = vunpack.c.l.b16 %v184
        %v320 = vunpack.c.l.b16 %v185
        %v321 = vunpack.c.l.b16 %v186
        %v322 = vunpack.c.l.b16 %v187
        %v323 = vunpack.c.l.b16 %v188
        %v324 = vunpack.c.l.b16 %v189
        %v325 = vunpack.c.l.b16 %v190
        %v326 = vunpack.c.l.b16 %v191
        %v327 = vunpack.c.l.b16 %v192
        %v328 = vunpack.c.l.b16 %v193
        %v329 = vunpack.c.l.b16 %v194
        %v330 = vunpack.c.l.b16 %v195
        %v331 = vunpack.c.l.b16 %v196
        %v332 = vunpack.c.l.b16 %v197
        %v333 = vunpack.c.l.b16 %v198
        %v334 = vunpack.c.l.b16 %v199
        %v335 = vunpack.c.l.b16 %v200
        %v336 = vunpack.c.l.b16 %v201
        %v337 = vunpack.c.l.b16 %v202
        %v338 = vunpack.c.l.b16 %v203
        %v339 = vunpack.c.l.b16 %v204
        %v340 = vunpack.c.l.b16 %v205
        %v341 = vunpack.c.l.b16 %v206
        %v342 = vunpack.c.l.b16 %v207
        %v343 = vunpack.c.l.b16 %v208
        %v344 = vunpack.c.l.b16 %v209
        %v345 = vunpack.c.l.b16 %v210
        %v346 = vunpack.c.l.b16 %v211
        %v347 = vpack.c.b16 %v284, %v283
        %v348 = vpack.c.b16 %v286, %v285
        %v349 = vpack.c.b16 %v288, %v287
        %v350 = vpack.c.b16 %v290, %v289
        %v351 = vpack.c.b16 %v292, %v291
        %v352 = vpack.c.b16 %v294, %v293
        %v353 = vpack.c.b16 %v296, %v295
        %v354 = vpack.c.b16 %v298, %v297
        %v355 = vpack.c.b16 %v300, %v299
        %v356 = vpack.c.b16 %v302, %v301
        %v357 = vpack.c.b16 %v304, %v303
        %v358 = vpack.c.b16 %v306, %v305
        %v359 = vpack.c.b16 %v308, %v307
        %v360 = vpack.c.b16 %v310, %v309
        %v361 = vpack.c.b16 %v312, %v311
        %v362 = vpack.c.b16 %v314, %v313
        %v363 = vpack.c.b16 %v316, %v315
        %v364 = vpack.c.b16 %v318, %v317
        %v365 = vpack.c.b16 %v320, %v319
        %v366 = vpack.c.b16 %v322, %v321
        %v367 = vpack.c.b16 %v324, %v323
        %v368 = vpack.c.b16 %v326, %v325
        %v369 = vpack.c.b16 %v328, %v327
        %v370 = vpack.c.b16 %v330, %v329
        %v371 = vpack.c.b16 %v332, %v331
        %v372 = vpack.c.b16 %v334, %v333
        %v373 = vpack.c.b16 %v336, %v335
        %v374 = vpack.c.b16 %v338, %v337
        %v375 = vpack.c.b16 %v340, %v339
        %v376 = vpack.c.b16 %v342, %v341
        %v377 = vpack.c.b16 %v344, %v343
        %v378 = vpack.c.b16 %v346, %v345
        %vm379 = vcmask 39936
        %v381 = vsel %vm379, %v347, 0
        %v384 = vsel %vm379, %v348, 0
        %v387 = vsel %vm379, %v349, 0
        %v390 = vsel %vm379, %v350, 0
        %v393 = vsel %vm379, %v351, 0
        %v396 = vsel %vm379, %v352, 0
        %v399 = vsel %vm379, %v353, 0
        %v402 = vsel %vm379, %v354, 0
        %v405 = vsel %vm379, %v355, 0
        %v408 = vsel %vm379, %v356, 0
        %v411 = vsel %vm379, %v357, 0
        %v414 = vsel %vm379, %v358, 0
        %v417 = vsel %vm379, %v359, 0
        %v420 = vsel %vm379, %v360, 0
        %v423 = vsel %vm379, %v361, 0
        %v426 = vsel %vm379, %v362, 0
        %v429 = vsel %vm379, %v363, 0
        %v432 = vsel %vm379, %v364, 0
        %v435 = vsel %vm379, %v365, 0
        %v438 = vsel %vm379, %v366, 0
        %v441 = vsel %vm379, %v367, 0
        %v444 = vsel %vm379, %v368, 0
        %v447 = vsel %vm379, %v369, 0
        %v450 = vsel %vm379, %v370, 0
        %v453 = vsel %vm379, %v371, 0
        %v456 = vsel %vm379, %v372, 0
        %v459 = vsel %vm379, %v373, 0
        %v462 = vsel %vm379, %v374, 0
        %v465 = vsel %vm379, %v375, 0
        %v468 = vsel %vm379, %v376, 0
        %v471 = vsel %vm379, %v377, 0
        %v474 = vsel %vm379, %v378, 0
        %vm476 = vcmask 1041408
        %vm477 = vcmask 1042432
        %v478 = vsel %vm476, 4294967295, 65535
        %v479 = vsel %vm477, %v478, 0
        %v481 = vand.u32 %v212, %v479
        %483 = vmatprep.subr.bf16.mxu0 0
        %484 = vmatpush1.bf16.msra.mxu0 %v481
        %485 = vmatprep.subr.bf16.mxu0 0
        %486 = vmatpush1.bf16.msra.mxu0 0
        %487 = vmatprep.subr.bf16.mxu0 0
        %488 = vmatpush1.bf16.msra.mxu0 0
        %489 = vmatprep.subr.bf16.mxu0 0
        %490 = vmatpush1.bf16.msra.mxu0 0
        %491 = vmatprep.subr.bf16.mxu0 0
        %492 = vmatpush1.bf16.msra.mxu0 0
        %493 = vmatprep.subr.bf16.mxu0 0
        %494 = vmatpush1.bf16.msra.mxu0 0
        %495 = vmatprep.subr.bf16.mxu0 0
        %496 = vmatpush1.bf16.msra.mxu0 0
        %497 = vmatprep.subr.bf16.mxu0 0
        %498 = vmatpush1.bf16.msra.mxu0 0
        %499 = vmatprep.subr.bf16.mxu0 0
        %500 = vmatpush1.bf16.msra.mxu0 0
        %501 = vmatprep.subr.bf16.mxu0 0
        %502 = vmatpush1.bf16.msra.mxu0 0
        %503 = vmatprep.subr.bf16.mxu0 0
        %504 = vmatpush1.bf16.msra.mxu0 0
        %505 = vmatprep.subr.bf16.mxu0 0
        %506 = vmatpush1.bf16.msra.mxu0 0
        %507 = vmatprep.subr.bf16.mxu0 0
        %508 = vmatpush1.bf16.msra.mxu0 0
        %509 = vmatprep.subr.bf16.mxu0 0
        %510 = vmatpush1.bf16.msra.mxu0 0
        %511 = vmatprep.subr.bf16.mxu0 0
        %512 = vmatpush1.bf16.msra.mxu0 0
        %513 = vmatprep.subr.bf16.mxu0 0
        %514 = vmatpush1.bf16.msra.mxu0 0
        %515 = vmatprep.mubr.bf16.mxu0 0
        %516 = vmatmul.mubr.bf16.gmra.mrb[0].mxu0 %v381
        %v517 = vpop.f32.mrb[0].mxu0
        %v518 = vadd.f32 %v218, %v517
        %v519 = vpop.f32.mrb[0].mxu0
        %v520 = vpop.f32.mrb[0].mxu0
        %v521 = vadd.f32 %v218, %v520
        %v522 = vpop.f32.mrb[0].mxu0
        %523 = vmatprep.mubr.bf16.mxu0 0
        %524 = vmatmul.mubr.bf16.gmra.mrb[0].mxu0 %v384
        %v525 = vpop.f32.mrb[0].mxu0
        %v526 = vadd.f32 %v218, %v525
        %v527 = vpop.f32.mrb[0].mxu0
        %v528 = vpop.f32.mrb[0].mxu0
        %v529 = vadd.f32 %v218, %v528
        %v530 = vpop.f32.mrb[0].mxu0
        %531 = vmatprep.mubr.bf16.mxu0 0
        %532 = vmatmul.mubr.bf16.gmra.mrb[0].mxu0 %v387
        %v533 = vpop.f32.mrb[0].mxu0
        %v534 = vadd.f32 %v218, %v533
        %v535 = vpop.f32.mrb[0].mxu0
        %v536 = vpop.f32.mrb[0].mxu0
        %v537 = vadd.f32 %v218, %v536
        %v538 = vpop.f32.mrb[0].mxu0
        %539 = vmatprep.mubr.bf16.mxu0 0
        %540 = vmatmul.mubr.bf16.gmra.mrb[0].mxu0 %v390
        %v541 = vpop.f32.mrb[0].mxu0
        %v542 = vadd.f32 %v218, %v541
        %v543 = vpop.f32.mrb[0].mxu0
        %v544 = vpop.f32.mrb[0].mxu0
        %v545 = vadd.f32 %v218, %v544
        %v546 = vpop.f32.mrb[0].mxu0
        %547 = vmatprep.mubr.bf16.mxu0 0
        %548 = vmatmul.mubr.bf16.gmra.mrb[0].mxu0 %v393
        %v549 = vpop.f32.mrb[0].mxu0
        %v550 = vadd.f32 %v218, %v549
        %v551 = vpop.f32.mrb[0].mxu0
        %v552 = vpop.f32.mrb[0].mxu0
        %v553 = vadd.f32 %v218, %v552
        %v554 = vpop.f32.mrb[0].mxu0
        %555 = vmatprep.mubr.bf16.mxu0 0
        %556 = vmatmul.mubr.bf16.gmra.mrb[0].mxu0 %v396
        %v557 = vpop.f32.mrb[0].mxu0
        %v558 = vadd.f32 %v218, %v557
        %v559 = vpop.f32.mrb[0].mxu0
        %v560 = vpop.f32.mrb[0].mxu0
        %v561 = vadd.f32 %v218, %v560
        %v562 = vpop.f32.mrb[0].mxu0
        %563 = vmatprep.mubr.bf16.mxu0 0
        %564 = vmatmul.mubr.bf16.gmra.mrb[0].mxu0 %v399
        %v565 = vpop.f32.mrb[0].mxu0
        %v566 = vadd.f32 %v218, %v565
        %v567 = vpop.f32.mrb[0].mxu0
        %v568 = vpop.f32.mrb[0].mxu0
        %v569 = vadd.f32 %v218, %v568
        %v570 = vpop.f32.mrb[0].mxu0
        %571 = vmatprep.mubr.bf16.mxu0 0
        %572 = vmatmul.mubr.bf16.gmra.mrb[0].mxu0 %v402
        %v573 = vpop.f32.mrb[0].mxu0
        %v574 = vadd.f32 %v218, %v573
        %v575 = vpop.f32.mrb[0].mxu0
        %v576 = vpop.f32.mrb[0].mxu0
        %v577 = vadd.f32 %v218, %v576
        %v578 = vpop.f32.mrb[0].mxu0
        %579 = vmatprep.mubr.bf16.mxu0 0
        %580 = vmatmul.mubr.bf16.gmra.mrb[0].mxu0 %v405
        %v581 = vpop.f32.mrb[0].mxu0
        %v582 = vadd.f32 %v218, %v581
        %v583 = vpop.f32.mrb[0].mxu0
        %v584 = vpop.f32.mrb[0].mxu0
        %v585 = vadd.f32 %v218, %v584
        %v586 = vpop.f32.mrb[0].mxu0
        %587 = vmatprep.mubr.bf16.mxu0 0
        %588 = vmatmul.mubr.bf16.gmra.mrb[0].mxu0 %v408
        %v589 = vpop.f32.mrb[0].mxu0
        %v590 = vadd.f32 %v218, %v589
        %v591 = vpop.f32.mrb[0].mxu0
        %v592 = vpop.f32.mrb[0].mxu0
        %v593 = vadd.f32 %v218, %v592
        %v594 = vpop.f32.mrb[0].mxu0
        %595 = vmatprep.mubr.bf16.mxu0 0
        %596 = vmatmul.mubr.bf16.gmra.mrb[0].mxu0 %v411
        %v597 = vpop.f32.mrb[0].mxu0
        %v598 = vadd.f32 %v218, %v597
        %v599 = vpop.f32.mrb[0].mxu0
        %v600 = vpop.f32.mrb[0].mxu0
        %v601 = vadd.f32 %v218, %v600
        %v602 = vpop.f32.mrb[0].mxu0
        %603 = vmatprep.mubr.bf16.mxu0 0
        %604 = vmatmul.mubr.bf16.gmra.mrb[0].mxu0 %v414
        %v605 = vpop.f32.mrb[0].mxu0
        %v606 = vadd.f32 %v218, %v605
        %v607 = vpop.f32.mrb[0].mxu0
        %v608 = vpop.f32.mrb[0].mxu0
        %v609 = vadd.f32 %v218, %v608
        %v610 = vpop.f32.mrb[0].mxu0
        %611 = vmatprep.mubr.bf16.mxu0 0
        %612 = vmatmul.mubr.bf16.gmra.mrb[0].mxu0 %v417
        %v613 = vpop.f32.mrb[0].mxu0
        %v614 = vadd.f32 %v218, %v613
        %v615 = vpop.f32.mrb[0].mxu0
        %v616 = vpop.f32.mrb[0].mxu0
        %v617 = vadd.f32 %v218, %v616
        %v618 = vpop.f32.mrb[0].mxu0
        %619 = vmatprep.mubr.bf16.mxu0 0
        %620 = vmatmul.mubr.bf16.gmra.mrb[0].mxu0 %v420
        %v621 = vpop.f32.mrb[0].mxu0
        %v622 = vadd.f32 %v218, %v621
        %v623 = vpop.f32.mrb[0].mxu0
        %v624 = vpop.f32.mrb[0].mxu0
        %v625 = vadd.f32 %v218, %v624
        %v626 = vpop.f32.mrb[0].mxu0
        %627 = vmatprep.mubr.bf16.mxu0 0
        %628 = vmatmul.mubr.bf16.gmra.mrb[0].mxu0 %v423
        %v629 = vpop.f32.mrb[0].mxu0
        %v630 = vadd.f32 %v218, %v629
        %v631 = vpop.f32.mrb[0].mxu0
        %v632 = vpop.f32.mrb[0].mxu0
        %v633 = vadd.f32 %v218, %v632
        %v634 = vpop.f32.mrb[0].mxu0
        %635 = vmatprep.mubr.bf16.mxu0 0
        %636 = vmatmul.mubr.bf16.gmra.mrb[0].mxu0 %v426
        %v637 = vpop.f32.mrb[0].mxu0
        %v638 = vadd.f32 %v218, %v637
        %v639 = vpop.f32.mrb[0].mxu0
        %v640 = vpop.f32.mrb[0].mxu0
        %v641 = vadd.f32 %v218, %v640
        %v642 = vpop.f32.mrb[0].mxu0
        %643 = vmatprep.mubr.bf16.mxu0 0
        %644 = vmatmul.mubr.bf16.gmra.mrb[0].mxu0 %v429
        %v645 = vpop.f32.mrb[0].mxu0
        %v646 = vadd.f32 %v218, %v645
        %v647 = vpop.f32.mrb[0].mxu0
        %v648 = vpop.f32.mrb[0].mxu0
        %v649 = vadd.f32 %v218, %v648
        %v650 = vpop.f32.mrb[0].mxu0
        %651 = vmatprep.mubr.bf16.mxu0 0
        %652 = vmatmul.mubr.bf16.gmra.mrb[0].mxu0 %v432
        %v653 = vpop.f32.mrb[0].mxu0
        %v654 = vadd.f32 %v218, %v653
        %v655 = vpop.f32.mrb[0].mxu0
        %v656 = vpop.f32.mrb[0].mxu0
        %v657 = vadd.f32 %v218, %v656
        %v658 = vpop.f32.mrb[0].mxu0
        %659 = vmatprep.mubr.bf16.mxu0 0
        %660 = vmatmul.mubr.bf16.gmra.mrb[0].mxu0 %v435
        %v661 = vpop.f32.mrb[0].mxu0
        %v662 = vadd.f32 %v218, %v661
        %v663 = vpop.f32.mrb[0].mxu0
        %v664 = vpop.f32.mrb[0].mxu0
        %v665 = vadd.f32 %v218, %v664
        %v666 = vpop.f32.mrb[0].mxu0
        %667 = vmatprep.mubr.bf16.mxu0 0
        %668 = vmatmul.mubr.bf16.gmra.mrb[0].mxu0 %v438
        %v669 = vpop.f32.mrb[0].mxu0
        %v670 = vadd.f32 %v218, %v669
        %v671 = vpop.f32.mrb[0].mxu0
        %v672 = vpop.f32.mrb[0].mxu0
        %v673 = vadd.f32 %v218, %v672
        %v674 = vpop.f32.mrb[0].mxu0
        %675 = vmatprep.mubr.bf16.mxu0 0
        %676 = vmatmul.mubr.bf16.gmra.mrb[0].mxu0 %v441
        %v677 = vpop.f32.mrb[0].mxu0
        %v678 = vadd.f32 %v218, %v677
        %v679 = vpop.f32.mrb[0].mxu0
        %v680 = vpop.f32.mrb[0].mxu0
        %v681 = vadd.f32 %v218, %v680
        %v682 = vpop.f32.mrb[0].mxu0
        %683 = vmatprep.mubr.bf16.mxu0 0
        %684 = vmatmul.mubr.bf16.gmra.mrb[0].mxu0 %v444
        %v685 = vpop.f32.mrb[0].mxu0
        %v686 = vadd.f32 %v218, %v685
        %v687 = vpop.f32.mrb[0].mxu0
        %v688 = vpop.f32.mrb[0].mxu0
        %v689 = vadd.f32 %v218, %v688
        %v690 = vpop.f32.mrb[0].mxu0
        %691 = vmatprep.mubr.bf16.mxu0 0
        %692 = vmatmul.mubr.bf16.gmra.mrb[0].mxu0 %v447
        %v693 = vpop.f32.mrb[0].mxu0
        %v694 = vadd.f32 %v218, %v693
        %v695 = vpop.f32.mrb[0].mxu0
        %v696 = vpop.f32.mrb[0].mxu0
        %v697 = vadd.f32 %v218, %v696
        %v698 = vpop.f32.mrb[0].mxu0
        %699 = vmatprep.mubr.bf16.mxu0 0
        %700 = vmatmul.mubr.bf16.gmra.mrb[0].mxu0 %v450
        %v701 = vpop.f32.mrb[0].mxu0
        %v702 = vadd.f32 %v218, %v701
        %v703 = vpop.f32.mrb[0].mxu0
        %v704 = vpop.f32.mrb[0].mxu0
        %v705 = vadd.f32 %v218, %v704
        %v706 = vpop.f32.mrb[0].mxu0
        %707 = vmatprep.mubr.bf16.mxu0 0
        %708 = vmatmul.mubr.bf16.gmra.mrb[0].mxu0 %v453
        %v709 = vpop.f32.mrb[0].mxu0
        %v710 = vadd.f32 %v218, %v709
        %v711 = vpop.f32.mrb[0].mxu0
        %v712 = vpop.f32.mrb[0].mxu0
        %v713 = vadd.f32 %v218, %v712
        %v714 = vpop.f32.mrb[0].mxu0
        %715 = vmatprep.mubr.bf16.mxu0 0
        %716 = vmatmul.mubr.bf16.gmra.mrb[0].mxu0 %v456
        %v717 = vpop.f32.mrb[0].mxu0
        %v718 = vadd.f32 %v218, %v717
        %v719 = vpop.f32.mrb[0].mxu0
        %v720 = vpop.f32.mrb[0].mxu0
        %v721 = vadd.f32 %v218, %v720
        %v722 = vpop.f32.mrb[0].mxu0
        %723 = vmatprep.mubr.bf16.mxu0 0
        %724 = vmatmul.mubr.bf16.gmra.mrb[0].mxu0 %v459
        %v725 = vpop.f32.mrb[0].mxu0
        %v726 = vadd.f32 %v218, %v725
        %v727 = vpop.f32.mrb[0].mxu0
        %v728 = vpop.f32.mrb[0].mxu0
        %v729 = vadd.f32 %v218, %v728
        %v730 = vpop.f32.mrb[0].mxu0
        %731 = vmatprep.mubr.bf16.mxu0 0
        %732 = vmatmul.mubr.bf16.gmra.mrb[0].mxu0 %v462
        %v733 = vpop.f32.mrb[0].mxu0
        %v734 = vadd.f32 %v218, %v733
        %v735 = vpop.f32.mrb[0].mxu0
        %v736 = vpop.f32.mrb[0].mxu0
        %v737 = vadd.f32 %v218, %v736
        %v738 = vpop.f32.mrb[0].mxu0
        %739 = vmatprep.mubr.bf16.mxu0 0
        %740 = vmatmul.mubr.bf16.gmra.mrb[0].mxu0 %v465
        %v741 = vpop.f32.mrb[0].mxu0
        %v742 = vadd.f32 %v218, %v741
        %v743 = vpop.f32.mrb[0].mxu0
        %v744 = vpop.f32.mrb[0].mxu0
        %v745 = vadd.f32 %v218, %v744
        %v746 = vpop.f32.mrb[0].mxu0
        %747 = vmatprep.mubr.bf16.mxu0 0
        %748 = vmatmul.mubr.bf16.gmra.mrb[0].mxu0 %v468
        %v749 = vpop.f32.mrb[0].mxu0
        %v750 = vadd.f32 %v218, %v749
        %v751 = vpop.f32.mrb[0].mxu0
        %v752 = vpop.f32.mrb[0].mxu0
        %v753 = vadd.f32 %v218, %v752
        %v754 = vpop.f32.mrb[0].mxu0
        %755 = vmatprep.mubr.bf16.mxu0 0
        %756 = vmatmul.mubr.bf16.gmra.mrb[0].mxu0 %v471
        %v757 = vpop.f32.mrb[0].mxu0
        %v758 = vadd.f32 %v218, %v757
        %v759 = vpop.f32.mrb[0].mxu0
        %v760 = vpop.f32.mrb[0].mxu0
        %v761 = vadd.f32 %v218, %v760
        %v762 = vpop.f32.mrb[0].mxu0
        %763 = vmatprep.mubr.bf16.mxu0 0
        %764 = vmatmul.mubr.bf16.gmra.mrb[0].mxu0 %v474
        %v765 = vpop.f32.mrb[0].mxu0
        %v766 = vadd.f32 %v218, %v765
        %v767 = vpop.f32.mrb[0].mxu0
        %v768 = vpop.f32.mrb[0].mxu0
        %v769 = vadd.f32 %v218, %v768
        %v770 = vpop.f32.mrb[0].mxu0
        %771 = vdwg.mxu0
        %vm772 = vcmp.gt.f32.partialorder %v518, 0.0
        %vm773 = vcmp.gt.f32.partialorder %v521, 0.0
        %vm774 = vcmp.gt.f32.partialorder %v526, 0.0
        %vm775 = vcmp.gt.f32.partialorder %v529, 0.0
        %vm776 = vcmp.gt.f32.partialorder %v534, 0.0
        %vm777 = vcmp.gt.f32.partialorder %v537, 0.0
        %vm778 = vcmp.gt.f32.partialorder %v542, 0.0
        %vm779 = vcmp.gt.f32.partialorder %v545, 0.0
        %vm780 = vcmp.gt.f32.partialorder %v550, 0.0
        %vm781 = vcmp.gt.f32.partialorder %v553, 0.0
        %vm782 = vcmp.gt.f32.partialorder %v558, 0.0
        %vm783 = vcmp.gt.f32.partialorder %v561, 0.0
        %vm784 = vcmp.gt.f32.partialorder %v566, 0.0
        %vm785 = vcmp.gt.f32.partialorder %v569, 0.0
        %vm786 = vcmp.gt.f32.partialorder %v574, 0.0
        %vm787 = vcmp.gt.f32.partialorder %v577, 0.0
        %vm788 = vcmp.gt.f32.partialorder %v582, 0.0
        %vm789 = vcmp.gt.f32.partialorder %v585, 0.0
        %vm790 = vcmp.gt.f32.partialorder %v590, 0.0
        %vm791 = vcmp.gt.f32.partialorder %v593, 0.0
        %vm792 = vcmp.gt.f32.partialorder %v598, 0.0
        %vm793 = vcmp.gt.f32.partialorder %v601, 0.0
        %vm794 = vcmp.gt.f32.partialorder %v606, 0.0
        %vm795 = vcmp.gt.f32.partialorder %v609, 0.0
        %vm796 = vcmp.gt.f32.partialorder %v614, 0.0
        %vm797 = vcmp.gt.f32.partialorder %v617, 0.0
        %vm798 = vcmp.gt.f32.partialorder %v622, 0.0
        %vm799 = vcmp.gt.f32.partialorder %v625, 0.0
        %vm800 = vcmp.gt.f32.partialorder %v630, 0.0
        %vm801 = vcmp.gt.f32.partialorder %v633, 0.0
        %vm802 = vcmp.gt.f32.partialorder %v638, 0.0
        %vm803 = vcmp.gt.f32.partialorder %v641, 0.0
        %vm804 = vcmp.gt.f32.partialorder %v646, 0.0
        %vm805 = vcmp.gt.f32.partialorder %v649, 0.0
        %vm806 = vcmp.gt.f32.partialorder %v654, 0.0
        %vm807 = vcmp.gt.f32.partialorder %v657, 0.0
        %vm808 = vcmp.gt.f32.partialorder %v662, 0.0
        %vm809 = vcmp.gt.f32.partialorder %v665, 0.0
        %vm810 = vcmp.gt.f32.partialorder %v670, 0.0
        %vm811 = vcmp.gt.f32.partialorder %v673, 0.0
        %vm812 = vcmp.gt.f32.partialorder %v678, 0.0
        %vm813 = vcmp.gt.f32.partialorder %v681, 0.0
        %vm814 = vcmp.gt.f32.partialorder %v686, 0.0
        %vm815 = vcmp.gt.f32.partialorder %v689, 0.0
        %vm816 = vcmp.gt.f32.partialorder %v694, 0.0
        %vm817 = vcmp.gt.f32.partialorder %v697, 0.0
        %vm818 = vcmp.gt.f32.partialorder %v702, 0.0
        %vm819 = vcmp.gt.f32.partialorder %v705, 0.0
        %vm820 = vcmp.gt.f32.partialorder %v710, 0.0
        %vm821 = vcmp.gt.f32.partialorder %v713, 0.0
        %vm822 = vcmp.gt.f32.partialorder %v718, 0.0
        %vm823 = vcmp.gt.f32.partialorder %v721, 0.0
        %vm824 = vcmp.gt.f32.partialorder %v726, 0.0
        %vm825 = vcmp.gt.f32.partialorder %v729, 0.0
        %vm826 = vcmp.gt.f32.partialorder %v734, 0.0
        %vm827 = vcmp.gt.f32.partialorder %v737, 0.0
        %vm828 = vcmp.gt.f32.partialorder %v742, 0.0
        %vm829 = vcmp.gt.f32.partialorder %v745, 0.0
        %vm830 = vcmp.gt.f32.partialorder %v750, 0.0
        %vm831 = vcmp.gt.f32.partialorder %v753, 0.0
        %vm832 = vcmp.gt.f32.partialorder %v758, 0.0
        %vm833 = vcmp.gt.f32.partialorder %v761, 0.0
        %vm834 = vcmp.gt.f32.partialorder %v766, 0.0
        %vm835 = vcmp.gt.f32.partialorder %v769, 0.0
        %v836 = vlaneseq
        %v837 = vshrl.u32 %v836, 7
        %v838 = vsub.s32 1, %v837
        %v839 = vrot.slane %v147, %v838
        %v840 = vmul.f32 %v839, %v518
        %v841 = vmul.f32 %v839, %v521
        %v842 = vmul.f32 %v839, %v526
        %v843 = vmul.f32 %v839, %v529
        %v844 = vmul.f32 %v839, %v534
        %v845 = vmul.f32 %v839, %v537
        %v846 = vmul.f32 %v839, %v542
        %v847 = vmul.f32 %v839, %v545
        %v848 = vmul.f32 %v839, %v550
        %v849 = vmul.f32 %v839, %v553
        %v850 = vmul.f32 %v839, %v558
        %v851 = vmul.f32 %v839, %v561
        %v852 = vmul.f32 %v839, %v566
        %v853 = vmul.f32 %v839, %v569
        %v854 = vmul.f32 %v839, %v574
        %v855 = vmul.f32 %v839, %v577
        %v856 = vmul.f32 %v839, %v582
        %v857 = vmul.f32 %v839, %v585
        %v858 = vmul.f32 %v839, %v590
        %v859 = vmul.f32 %v839, %v593
        %v860 = vmul.f32 %v839, %v598
        %v861 = vmul.f32 %v839, %v601
        %v862 = vmul.f32 %v839, %v606
        %v863 = vmul.f32 %v839, %v609
        %v864 = vmul.f32 %v839, %v614
        %v865 = vmul.f32 %v839, %v617
        %v866 = vmul.f32 %v839, %v622
        %v867 = vmul.f32 %v839, %v625
        %v868 = vmul.f32 %v839, %v630
        %v869 = vmul.f32 %v839, %v633
        %v870 = vmul.f32 %v839, %v638
        %v871 = vmul.f32 %v839, %v641
        %v872 = vmul.f32 %v839, %v646
        %v873 = vmul.f32 %v839, %v649
        %v874 = vmul.f32 %v839, %v654
        %v875 = vmul.f32 %v839, %v657
        %v876 = vmul.f32 %v839, %v662
        %v877 = vmul.f32 %v839, %v665
        %v878 = vmul.f32 %v839, %v670
        %v879 = vmul.f32 %v839, %v673
        %v880 = vmul.f32 %v839, %v678
        %v881 = vmul.f32 %v839, %v681
        %v882 = vmul.f32 %v839, %v686
        %v883 = vmul.f32 %v839, %v689
        %v884 = vmul.f32 %v839, %v694
        %v885 = vmul.f32 %v839, %v697
        %v886 = vmul.f32 %v839, %v702
        %v887 = vmul.f32 %v839, %v705
        %v888 = vmul.f32 %v839, %v710
        %v889 = vmul.f32 %v839, %v713
        %v890 = vmul.f32 %v839, %v718
        %v891 = vmul.f32 %v839, %v721
        %v892 = vmul.f32 %v839, %v726
        %v893 = vmul.f32 %v839, %v729
        %v894 = vmul.f32 %v839, %v734
        %v895 = vmul.f32 %v839, %v737
        %v896 = vmul.f32 %v839, %v742
        %v897 = vmul.f32 %v839, %v745
        %v898 = vmul.f32 %v839, %v750
        %v899 = vmul.f32 %v839, %v753
        %v900 = vmul.f32 %v839, %v758
        %v901 = vmul.f32 %v839, %v761
        %v902 = vmul.f32 %v839, %v766
        %v903 = vmul.f32 %v839, %v769
        %v904 = vsel %vm772, %v518, %v840
        %v905 = vsel %vm773, %v521, %v841
        %v906 = vsel %vm774, %v526, %v842
        %v907 = vsel %vm775, %v529, %v843
        %v908 = vsel %vm776, %v534, %v844
        %v909 = vsel %vm777, %v537, %v845
        %v910 = vsel %vm778, %v542, %v846
        %v911 = vsel %vm779, %v545, %v847
        %v912 = vsel %vm780, %v550, %v848
        %v913 = vsel %vm781, %v553, %v849
        %v914 = vsel %vm782, %v558, %v850
        %v915 = vsel %vm783, %v561, %v851
        %v916 = vsel %vm784, %v566, %v852
        %v917 = vsel %vm785, %v569, %v853
        %v918 = vsel %vm786, %v574, %v854
        %v919 = vsel %vm787, %v577, %v855
        %v920 = vsel %vm788, %v582, %v856
        %v921 = vsel %vm789, %v585, %v857
        %v922 = vsel %vm790, %v590, %v858
        %v923 = vsel %vm791, %v593, %v859
        %v924 = vsel %vm792, %v598, %v860
        %v925 = vsel %vm793, %v601, %v861
        %v926 = vsel %vm794, %v606, %v862
        %v927 = vsel %vm795, %v609, %v863
        %v928 = vsel %vm796, %v614, %v864
        %v929 = vsel %vm797, %v617, %v865
        %v930 = vsel %vm798, %v622, %v866
        %v931 = vsel %vm799, %v625, %v867
        %v932 = vsel %vm800, %v630, %v868
        %v933 = vsel %vm801, %v633, %v869
        %v934 = vsel %vm802, %v638, %v870
        %v935 = vsel %vm803, %v641, %v871
        %v936 = vsel %vm804, %v646, %v872
        %v937 = vsel %vm805, %v649, %v873
        %v938 = vsel %vm806, %v654, %v874
        %v939 = vsel %vm807, %v657, %v875
        %v940 = vsel %vm808, %v662, %v876
        %v941 = vsel %vm809, %v665, %v877
        %v942 = vsel %vm810, %v670, %v878
        %v943 = vsel %vm811, %v673, %v879
        %v944 = vsel %vm812, %v678, %v880
        %v945 = vsel %vm813, %v681, %v881
        %v946 = vsel %vm814, %v686, %v882
        %v947 = vsel %vm815, %v689, %v883
        %v948 = vsel %vm816, %v694, %v884
        %v949 = vsel %vm817, %v697, %v885
        %v950 = vsel %vm818, %v702, %v886
        %v951 = vsel %vm819, %v705, %v887
        %v952 = vsel %vm820, %v710, %v888
        %v953 = vsel %vm821, %v713, %v889
        %v954 = vsel %vm822, %v718, %v890
        %v955 = vsel %vm823, %v721, %v891
        %v956 = vsel %vm824, %v726, %v892
        %v957 = vsel %vm825, %v729, %v893
        %v958 = vsel %vm826, %v734, %v894
        %v959 = vsel %vm827, %v737, %v895
        %v960 = vsel %vm828, %v742, %v896
        %v961 = vsel %vm829, %v745, %v897
        %v962 = vsel %vm830, %v750, %v898
        %v963 = vsel %vm831, %v753, %v899
        %v964 = vsel %vm832, %v758, %v900
        %v965 = vsel %vm833, %v761, %v901
        %v966 = vsel %vm834, %v766, %v902
        %v967 = vsel %vm835, %v769, %v903
        %v968 = vpack.c.bf16 %v905, %v904
        %v969 = vpack.c.bf16 %v907, %v906
        %v970 = vpack.c.bf16 %v909, %v908
        %v971 = vpack.c.bf16 %v911, %v910
        %v972 = vpack.c.bf16 %v913, %v912
        %v973 = vpack.c.bf16 %v915, %v914
        %v974 = vpack.c.bf16 %v917, %v916
        %v975 = vpack.c.bf16 %v919, %v918
        %v976 = vpack.c.bf16 %v921, %v920
        %v977 = vpack.c.bf16 %v923, %v922
        %v978 = vpack.c.bf16 %v925, %v924
        %v979 = vpack.c.bf16 %v927, %v926
        %v980 = vpack.c.bf16 %v929, %v928
        %v981 = vpack.c.bf16 %v931, %v930
        %v982 = vpack.c.bf16 %v933, %v932
        %v983 = vpack.c.bf16 %v935, %v934
        %v984 = vpack.c.bf16 %v937, %v936
        %v985 = vpack.c.bf16 %v939, %v938
        %v986 = vpack.c.bf16 %v941, %v940
        %v987 = vpack.c.bf16 %v943, %v942
        %v988 = vpack.c.bf16 %v945, %v944
        %v989 = vpack.c.bf16 %v947, %v946
        %v990 = vpack.c.bf16 %v949, %v948
        %v991 = vpack.c.bf16 %v951, %v950
        %v992 = vpack.c.bf16 %v953, %v952
        %v993 = vpack.c.bf16 %v955, %v954
        %v994 = vpack.c.bf16 %v957, %v956
        %v995 = vpack.c.bf16 %v959, %v958
        %v996 = vpack.c.bf16 %v961, %v960
        %v997 = vpack.c.bf16 %v963, %v962
        %v998 = vpack.c.bf16 %v965, %v964
        %v999 = vpack.c.bf16 %v967, %v966
        %v1000 = vld [vmem:[%s1 + $0x8] sm:$0xf]
        %v1001 = vld [vmem:[%s1 + $0xc] sm:$0xf]
        %v1002 = vld [vmem:[%s1 + $0x10] sm:$0xf]
        %v1003 = vld [vmem:[%s1 + $0x14] sm:$0xf]
        %v1004 = vld [vmem:[%s1 + $0x18] sm:$0xf]
        %v1005 = vld [vmem:[%s1 + $0x1c] sm:$0xf]
        %v1006 = vld [vmem:[%s1 + $0x20] sm:$0xf]
        %v1007 = vld [vmem:[%s1 + $0x24] sm:$0xf]
        %v1008 = vld [vmem:[%s1 + $0x28] sm:$0xf]
        %v1009 = vld [vmem:[%s1 + $0x2c] sm:$0xf]
        %v1010 = vld [vmem:[%s1 + $0x30] sm:$0xf]
        %v1011 = vld [vmem:[%s1 + $0x34] sm:$0xf]
        %v1012 = vld [vmem:[%s1 + $0x38] sm:$0xf]
        %v1013 = vld [vmem:[%s1 + $0x3c] sm:$0xf]
        %v1014 = vld [vmem:[%s1 + $0x40] sm:$0xf]
        %v1015 = vld [vmem:[%s1 + $0x44] sm:$0xf]
        %v1016 = vld [vmem:[%s1 + $0x48] sm:$0x1]
        %v1017 = vunpack.c.l.bf16 %v1016
        %v1018 = vlaneseq
        %v1019 = vshrl.u32 %v1018, 7
        %v1020 = vsub.s32 0, %v1019
        %v1021 = vrot.slane %v1017, %v1020
        %v1038 = vunpack.c.l.b16 %v1000
        %v1039 = vunpack.c.l.b16 %v1001
        %v1040 = vunpack.c.l.b16 %v1002
        %v1041 = vunpack.c.l.b16 %v1003
        %v1042 = vunpack.c.l.b16 %v1004
        %v1043 = vunpack.c.l.b16 %v1005
        %v1044 = vunpack.c.l.b16 %v1006
        %v1045 = vunpack.c.l.b16 %v1007
        %v1046 = vunpack.c.l.b16 %v1008
        %v1047 = vunpack.c.l.b16 %v1009
        %v1048 = vunpack.c.l.b16 %v1010
        %v1049 = vunpack.c.l.b16 %v1011
        %v1050 = vunpack.c.l.b16 %v1012
        %v1051 = vunpack.c.l.b16 %v1013
        %v1052 = vunpack.c.l.b16 %v1014
        %v1053 = vunpack.c.l.b16 %v1015
        %v1054 = vpack.c.b16 %v1039, %v1038
        %v1055 = vpack.c.b16 %v1041, %v1040
        %v1056 = vpack.c.b16 %v1043, %v1042
        %v1057 = vpack.c.b16 %v1045, %v1044
        %v1058 = vpack.c.b16 %v1047, %v1046
        %v1059 = vpack.c.b16 %v1049, %v1048
        %v1060 = vpack.c.b16 %v1051, %v1050
        %v1061 = vpack.c.b16 %v1053, %v1052
        %1070 = vmatprep.subr.bf16.mxu0 0
        %1071 = vmatpush1.bf16.msra.mxu0 %v1054
        %1072 = vmatprep.subr.bf16.mxu0 0
        %1073 = vmatpush1.bf16.msra.mxu0 %v1055
        %1074 = vmatprep.subr.bf16.mxu0 0
        %1075 = vmatpush1.bf16.msra.mxu0 %v1056
        %1076 = vmatprep.subr.bf16.mxu0 0
        %1077 = vmatpush1.bf16.msra.mxu0 %v1057
        %1078 = vmatprep.subr.bf16.mxu0 0
        %1079 = vmatpush1.bf16.msra.mxu0 %v1058
        %1080 = vmatprep.subr.bf16.mxu0 0
        %1081 = vmatpush1.bf16.msra.mxu0 %v1059
        %1082 = vmatprep.subr.bf16.mxu0 0
        %1083 = vmatpush1.bf16.msra.mxu0 %v1060
        %1084 = vmatprep.subr.bf16.mxu0 0
        %1085 = vmatpush1.bf16.msra.mxu0 %v1061
        %1086 = vmatprep.subr.bf16.mxu0 0
        %1087 = vmatpush1.bf16.msra.mxu0 0
        %1088 = vmatprep.subr.bf16.mxu0 0
        %1089 = vmatpush1.bf16.msra.mxu0 0
        %1090 = vmatprep.subr.bf16.mxu0 0
        %1091 = vmatpush1.bf16.msra.mxu0 0
        %1092 = vmatprep.subr.bf16.mxu0 0
        %1093 = vmatpush1.bf16.msra.mxu0 0
        %1094 = vmatprep.subr.bf16.mxu0 0
        %1095 = vmatpush1.bf16.msra.mxu0 0
        %1096 = vmatprep.subr.bf16.mxu0 0
        %1097 = vmatpush1.bf16.msra.mxu0 0
        %1098 = vmatprep.subr.bf16.mxu0 0
        %1099 = vmatpush1.bf16.msra.mxu0 0
        %1100 = vmatprep.subr.bf16.mxu0 0
        %1101 = vmatpush1.bf16.msra.mxu0 0
        %1102 = vmatprep.mubr.bf16.mxu0 0
        %1103 = vmatmul.mubr.bf16.gmra.mrb[0].mxu0 %v968
        %v1104 = vpop.f32.mrb[0].mxu0
        %v1105 = vadd.f32 %v1021, %v1104
        %v1106 = vpop.f32.mrb[0].mxu0
        %v1107 = vpop.f32.mrb[0].mxu0
        %v1108 = vadd.f32 %v1021, %v1107
        %v1109 = vpop.f32.mrb[0].mxu0
        %1110 = vmatprep.mubr.bf16.mxu0 0
        %1111 = vmatmul.mubr.bf16.gmra.mrb[0].mxu0 %v969
        %v1112 = vpop.f32.mrb[0].mxu0
        %v1113 = vadd.f32 %v1021, %v1112
        %v1114 = vpop.f32.mrb[0].mxu0
        %v1115 = vpop.f32.mrb[0].mxu0
        %v1116 = vadd.f32 %v1021, %v1115
        %v1117 = vpop.f32.mrb[0].mxu0
        %1118 = vmatprep.mubr.bf16.mxu0 0
        %1119 = vmatmul.mubr.bf16.gmra.mrb[0].mxu0 %v970
        %v1120 = vpop.f32.mrb[0].mxu0
        %v1121 = vadd.f32 %v1021, %v1120
        %v1122 = vpop.f32.mrb[0].mxu0
        %v1123 = vpop.f32.mrb[0].mxu0
        %v1124 = vadd.f32 %v1021, %v1123
        %v1125 = vpop.f32.mrb[0].mxu0
        %1126 = vmatprep.mubr.bf16.mxu0 0
        %1127 = vmatmul.mubr.bf16.gmra.mrb[0].mxu0 %v971
        %v1128 = vpop.f32.mrb[0].mxu0
        %v1129 = vadd.f32 %v1021, %v1128
        %v1130 = vpop.f32.mrb[0].mxu0
        %v1131 = vpop.f32.mrb[0].mxu0
        %v1132 = vadd.f32 %v1021, %v1131
        %v1133 = vpop.f32.mrb[0].mxu0
        %1134 = vmatprep.mubr.bf16.mxu0 0
        %1135 = vmatmul.mubr.bf16.gmra.mrb[0].mxu0 %v972
        %v1136 = vpop.f32.mrb[0].mxu0
        %v1137 = vadd.f32 %v1021, %v1136
        %v1138 = vpop.f32.mrb[0].mxu0
        %v1139 = vpop.f32.mrb[0].mxu0
        %v1140 = vadd.f32 %v1021, %v1139
        %v1141 = vpop.f32.mrb[0].mxu0
        %1142 = vmatprep.mubr.bf16.mxu0 0
        %1143 = vmatmul.mubr.bf16.gmra.mrb[0].mxu0 %v973
        %v1144 = vpop.f32.mrb[0].mxu0
        %v1145 = vadd.f32 %v1021, %v1144
        %v1146 = vpop.f32.mrb[0].mxu0
        %v1147 = vpop.f32.mrb[0].mxu0
        %v1148 = vadd.f32 %v1021, %v1147
        %v1149 = vpop.f32.mrb[0].mxu0
        %1150 = vmatprep.mubr.bf16.mxu0 0
        %1151 = vmatmul.mubr.bf16.gmra.mrb[0].mxu0 %v974
        %v1152 = vpop.f32.mrb[0].mxu0
        %v1153 = vadd.f32 %v1021, %v1152
        %v1154 = vpop.f32.mrb[0].mxu0
        %v1155 = vpop.f32.mrb[0].mxu0
        %v1156 = vadd.f32 %v1021, %v1155
        %v1157 = vpop.f32.mrb[0].mxu0
        %1158 = vmatprep.mubr.bf16.mxu0 0
        %1159 = vmatmul.mubr.bf16.gmra.mrb[0].mxu0 %v975
        %v1160 = vpop.f32.mrb[0].mxu0
        %v1161 = vadd.f32 %v1021, %v1160
        %v1162 = vpop.f32.mrb[0].mxu0
        %v1163 = vpop.f32.mrb[0].mxu0
        %v1164 = vadd.f32 %v1021, %v1163
        %v1165 = vpop.f32.mrb[0].mxu0
        %1166 = vmatprep.mubr.bf16.mxu0 0
        %1167 = vmatmul.mubr.bf16.gmra.mrb[0].mxu0 %v976
        %v1168 = vpop.f32.mrb[0].mxu0
        %v1169 = vadd.f32 %v1021, %v1168
        %v1170 = vpop.f32.mrb[0].mxu0
        %v1171 = vpop.f32.mrb[0].mxu0
        %v1172 = vadd.f32 %v1021, %v1171
        %v1173 = vpop.f32.mrb[0].mxu0
        %1174 = vmatprep.mubr.bf16.mxu0 0
        %1175 = vmatmul.mubr.bf16.gmra.mrb[0].mxu0 %v977
        %v1176 = vpop.f32.mrb[0].mxu0
        %v1177 = vadd.f32 %v1021, %v1176
        %v1178 = vpop.f32.mrb[0].mxu0
        %v1179 = vpop.f32.mrb[0].mxu0
        %v1180 = vadd.f32 %v1021, %v1179
        %v1181 = vpop.f32.mrb[0].mxu0
        %1182 = vmatprep.mubr.bf16.mxu0 0
        %1183 = vmatmul.mubr.bf16.gmra.mrb[0].mxu0 %v978
        %v1184 = vpop.f32.mrb[0].mxu0
        %v1185 = vadd.f32 %v1021, %v1184
        %v1186 = vpop.f32.mrb[0].mxu0
        %v1187 = vpop.f32.mrb[0].mxu0
        %v1188 = vadd.f32 %v1021, %v1187
        %v1189 = vpop.f32.mrb[0].mxu0
        %1190 = vmatprep.mubr.bf16.mxu0 0
        %1191 = vmatmul.mubr.bf16.gmra.mrb[0].mxu0 %v979
        %v1192 = vpop.f32.mrb[0].mxu0
        %v1193 = vadd.f32 %v1021, %v1192
        %v1194 = vpop.f32.mrb[0].mxu0
        %v1195 = vpop.f32.mrb[0].mxu0
        %v1196 = vadd.f32 %v1021, %v1195
        %v1197 = vpop.f32.mrb[0].mxu0
        %1198 = vmatprep.mubr.bf16.mxu0 0
        %1199 = vmatmul.mubr.bf16.gmra.mrb[0].mxu0 %v980
        %v1200 = vpop.f32.mrb[0].mxu0
        %v1201 = vadd.f32 %v1021, %v1200
        %v1202 = vpop.f32.mrb[0].mxu0
        %v1203 = vpop.f32.mrb[0].mxu0
        %v1204 = vadd.f32 %v1021, %v1203
        %v1205 = vpop.f32.mrb[0].mxu0
        %1206 = vmatprep.mubr.bf16.mxu0 0
        %1207 = vmatmul.mubr.bf16.gmra.mrb[0].mxu0 %v981
        %v1208 = vpop.f32.mrb[0].mxu0
        %v1209 = vadd.f32 %v1021, %v1208
        %v1210 = vpop.f32.mrb[0].mxu0
        %v1211 = vpop.f32.mrb[0].mxu0
        %v1212 = vadd.f32 %v1021, %v1211
        %v1213 = vpop.f32.mrb[0].mxu0
        %1214 = vmatprep.mubr.bf16.mxu0 0
        %1215 = vmatmul.mubr.bf16.gmra.mrb[0].mxu0 %v982
        %v1216 = vpop.f32.mrb[0].mxu0
        %v1217 = vadd.f32 %v1021, %v1216
        %v1218 = vpop.f32.mrb[0].mxu0
        %v1219 = vpop.f32.mrb[0].mxu0
        %v1220 = vadd.f32 %v1021, %v1219
        %v1221 = vpop.f32.mrb[0].mxu0
        %1222 = vmatprep.mubr.bf16.mxu0 0
        %1223 = vmatmul.mubr.bf16.gmra.mrb[0].mxu0 %v983
        %v1224 = vpop.f32.mrb[0].mxu0
        %v1225 = vadd.f32 %v1021, %v1224
        %v1226 = vpop.f32.mrb[0].mxu0
        %v1227 = vpop.f32.mrb[0].mxu0
        %v1228 = vadd.f32 %v1021, %v1227
        %v1229 = vpop.f32.mrb[0].mxu0
        %1230 = vmatprep.mubr.bf16.mxu0 0
        %1231 = vmatmul.mubr.bf16.gmra.mrb[0].mxu0 %v984
        %v1232 = vpop.f32.mrb[0].mxu0
        %v1233 = vadd.f32 %v1021, %v1232
        %v1234 = vpop.f32.mrb[0].mxu0
        %v1235 = vpop.f32.mrb[0].mxu0
        %v1236 = vadd.f32 %v1021, %v1235
        %v1237 = vpop.f32.mrb[0].mxu0
        %1238 = vmatprep.mubr.bf16.mxu0 0
        %1239 = vmatmul.mubr.bf16.gmra.mrb[0].mxu0 %v985
        %v1240 = vpop.f32.mrb[0].mxu0
        %v1241 = vadd.f32 %v1021, %v1240
        %v1242 = vpop.f32.mrb[0].mxu0
        %v1243 = vpop.f32.mrb[0].mxu0
        %v1244 = vadd.f32 %v1021, %v1243
        %v1245 = vpop.f32.mrb[0].mxu0
        %1246 = vmatprep.mubr.bf16.mxu0 0
        %1247 = vmatmul.mubr.bf16.gmra.mrb[0].mxu0 %v986
        %v1248 = vpop.f32.mrb[0].mxu0
        %v1249 = vadd.f32 %v1021, %v1248
        %v1250 = vpop.f32.mrb[0].mxu0
        %v1251 = vpop.f32.mrb[0].mxu0
        %v1252 = vadd.f32 %v1021, %v1251
        %v1253 = vpop.f32.mrb[0].mxu0
        %1254 = vmatprep.mubr.bf16.mxu0 0
        %1255 = vmatmul.mubr.bf16.gmra.mrb[0].mxu0 %v987
        %v1256 = vpop.f32.mrb[0].mxu0
        %v1257 = vadd.f32 %v1021, %v1256
        %v1258 = vpop.f32.mrb[0].mxu0
        %v1259 = vpop.f32.mrb[0].mxu0
        %v1260 = vadd.f32 %v1021, %v1259
        %v1261 = vpop.f32.mrb[0].mxu0
        %1262 = vmatprep.mubr.bf16.mxu0 0
        %1263 = vmatmul.mubr.bf16.gmra.mrb[0].mxu0 %v988
        %v1264 = vpop.f32.mrb[0].mxu0
        %v1265 = vadd.f32 %v1021, %v1264
        %v1266 = vpop.f32.mrb[0].mxu0
        %v1267 = vpop.f32.mrb[0].mxu0
        %v1268 = vadd.f32 %v1021, %v1267
        %v1269 = vpop.f32.mrb[0].mxu0
        %1270 = vmatprep.mubr.bf16.mxu0 0
        %1271 = vmatmul.mubr.bf16.gmra.mrb[0].mxu0 %v989
        %v1272 = vpop.f32.mrb[0].mxu0
        %v1273 = vadd.f32 %v1021, %v1272
        %v1274 = vpop.f32.mrb[0].mxu0
        %v1275 = vpop.f32.mrb[0].mxu0
        %v1276 = vadd.f32 %v1021, %v1275
        %v1277 = vpop.f32.mrb[0].mxu0
        %1278 = vmatprep.mubr.bf16.mxu0 0
        %1279 = vmatmul.mubr.bf16.gmra.mrb[0].mxu0 %v990
        %v1280 = vpop.f32.mrb[0].mxu0
        %v1281 = vadd.f32 %v1021, %v1280
        %v1282 = vpop.f32.mrb[0].mxu0
        %v1283 = vpop.f32.mrb[0].mxu0
        %v1284 = vadd.f32 %v1021, %v1283
        %v1285 = vpop.f32.mrb[0].mxu0
        %1286 = vmatprep.mubr.bf16.mxu0 0
        %1287 = vmatmul.mubr.bf16.gmra.mrb[0].mxu0 %v991
        %v1288 = vpop.f32.mrb[0].mxu0
        %v1289 = vadd.f32 %v1021, %v1288
        %v1290 = vpop.f32.mrb[0].mxu0
        %v1291 = vpop.f32.mrb[0].mxu0
        %v1292 = vadd.f32 %v1021, %v1291
        %v1293 = vpop.f32.mrb[0].mxu0
        %1294 = vmatprep.mubr.bf16.mxu0 0
        %1295 = vmatmul.mubr.bf16.gmra.mrb[0].mxu0 %v992
        %v1296 = vpop.f32.mrb[0].mxu0
        %v1297 = vadd.f32 %v1021, %v1296
        %v1298 = vpop.f32.mrb[0].mxu0
        %v1299 = vpop.f32.mrb[0].mxu0
        %v1300 = vadd.f32 %v1021, %v1299
        %v1301 = vpop.f32.mrb[0].mxu0
        %1302 = vmatprep.mubr.bf16.mxu0 0
        %1303 = vmatmul.mubr.bf16.gmra.mrb[0].mxu0 %v993
        %v1304 = vpop.f32.mrb[0].mxu0
        %v1305 = vadd.f32 %v1021, %v1304
        %v1306 = vpop.f32.mrb[0].mxu0
        %v1307 = vpop.f32.mrb[0].mxu0
        %v1308 = vadd.f32 %v1021, %v1307
        %v1309 = vpop.f32.mrb[0].mxu0
        %1310 = vmatprep.mubr.bf16.mxu0 0
        %1311 = vmatmul.mubr.bf16.gmra.mrb[0].mxu0 %v994
        %v1312 = vpop.f32.mrb[0].mxu0
        %v1313 = vadd.f32 %v1021, %v1312
        %v1314 = vpop.f32.mrb[0].mxu0
        %v1315 = vpop.f32.mrb[0].mxu0
        %v1316 = vadd.f32 %v1021, %v1315
        %v1317 = vpop.f32.mrb[0].mxu0
        %1318 = vmatprep.mubr.bf16.mxu0 0
        %1319 = vmatmul.mubr.bf16.gmra.mrb[0].mxu0 %v995
        %v1320 = vpop.f32.mrb[0].mxu0
        %v1321 = vadd.f32 %v1021, %v1320
        %v1322 = vpop.f32.mrb[0].mxu0
        %v1323 = vpop.f32.mrb[0].mxu0
        %v1324 = vadd.f32 %v1021, %v1323
        %v1325 = vpop.f32.mrb[0].mxu0
        %1326 = vmatprep.mubr.bf16.mxu0 0
        %1327 = vmatmul.mubr.bf16.gmra.mrb[0].mxu0 %v996
        %v1328 = vpop.f32.mrb[0].mxu0
        %v1329 = vadd.f32 %v1021, %v1328
        %v1330 = vpop.f32.mrb[0].mxu0
        %v1331 = vpop.f32.mrb[0].mxu0
        %v1332 = vadd.f32 %v1021, %v1331
        %v1333 = vpop.f32.mrb[0].mxu0
        %1334 = vmatprep.mubr.bf16.mxu0 0
        %1335 = vmatmul.mubr.bf16.gmra.mrb[0].mxu0 %v997
        %v1336 = vpop.f32.mrb[0].mxu0
        %v1337 = vadd.f32 %v1021, %v1336
        %v1338 = vpop.f32.mrb[0].mxu0
        %v1339 = vpop.f32.mrb[0].mxu0
        %v1340 = vadd.f32 %v1021, %v1339
        %v1341 = vpop.f32.mrb[0].mxu0
        %1342 = vmatprep.mubr.bf16.mxu0 0
        %1343 = vmatmul.mubr.bf16.gmra.mrb[0].mxu0 %v998
        %v1344 = vpop.f32.mrb[0].mxu0
        %v1345 = vadd.f32 %v1021, %v1344
        %v1346 = vpop.f32.mrb[0].mxu0
        %v1347 = vpop.f32.mrb[0].mxu0
        %v1348 = vadd.f32 %v1021, %v1347
        %v1349 = vpop.f32.mrb[0].mxu0
        %1350 = vmatprep.mubr.bf16.mxu0 0
        %1351 = vmatmul.mubr.bf16.gmra.mrb[0].mxu0 %v999
        %v1352 = vpop.f32.mrb[0].mxu0
        %v1353 = vadd.f32 %v1021, %v1352
        %v1354 = vpop.f32.mrb[0].mxu0
        %v1355 = vpop.f32.mrb[0].mxu0
        %v1356 = vadd.f32 %v1021, %v1355
        %v1357 = vpop.f32.mrb[0].mxu0
        %1358 = vdwg.mxu0
        %vm1359 = vcmp.gt.f32.partialorder %v1105, 0.0
        %vm1360 = vcmp.gt.f32.partialorder %v1108, 0.0
        %vm1361 = vcmp.gt.f32.partialorder %v1113, 0.0
        %vm1362 = vcmp.gt.f32.partialorder %v1116, 0.0
        %vm1363 = vcmp.gt.f32.partialorder %v1121, 0.0
        %vm1364 = vcmp.gt.f32.partialorder %v1124, 0.0
        %vm1365 = vcmp.gt.f32.partialorder %v1129, 0.0
        %vm1366 = vcmp.gt.f32.partialorder %v1132, 0.0
        %vm1367 = vcmp.gt.f32.partialorder %v1137, 0.0
        %vm1368 = vcmp.gt.f32.partialorder %v1140, 0.0
        %vm1369 = vcmp.gt.f32.partialorder %v1145, 0.0
        %vm1370 = vcmp.gt.f32.partialorder %v1148, 0.0
        %vm1371 = vcmp.gt.f32.partialorder %v1153, 0.0
        %vm1372 = vcmp.gt.f32.partialorder %v1156, 0.0
        %vm1373 = vcmp.gt.f32.partialorder %v1161, 0.0
        %vm1374 = vcmp.gt.f32.partialorder %v1164, 0.0
        %vm1375 = vcmp.gt.f32.partialorder %v1169, 0.0
        %vm1376 = vcmp.gt.f32.partialorder %v1172, 0.0
        %vm1377 = vcmp.gt.f32.partialorder %v1177, 0.0
        %vm1378 = vcmp.gt.f32.partialorder %v1180, 0.0
        %vm1379 = vcmp.gt.f32.partialorder %v1185, 0.0
        %vm1380 = vcmp.gt.f32.partialorder %v1188, 0.0
        %vm1381 = vcmp.gt.f32.partialorder %v1193, 0.0
        %vm1382 = vcmp.gt.f32.partialorder %v1196, 0.0
        %vm1383 = vcmp.gt.f32.partialorder %v1201, 0.0
        %vm1384 = vcmp.gt.f32.partialorder %v1204, 0.0
        %vm1385 = vcmp.gt.f32.partialorder %v1209, 0.0
        %vm1386 = vcmp.gt.f32.partialorder %v1212, 0.0
        %vm1387 = vcmp.gt.f32.partialorder %v1217, 0.0
        %vm1388 = vcmp.gt.f32.partialorder %v1220, 0.0
        %vm1389 = vcmp.gt.f32.partialorder %v1225, 0.0
        %vm1390 = vcmp.gt.f32.partialorder %v1228, 0.0
        %vm1391 = vcmp.gt.f32.partialorder %v1233, 0.0
        %vm1392 = vcmp.gt.f32.partialorder %v1236, 0.0
        %vm1393 = vcmp.gt.f32.partialorder %v1241, 0.0
        %vm1394 = vcmp.gt.f32.partialorder %v1244, 0.0
        %vm1395 = vcmp.gt.f32.partialorder %v1249, 0.0
        %vm1396 = vcmp.gt.f32.partialorder %v1252, 0.0
        %vm1397 = vcmp.gt.f32.partialorder %v1257, 0.0
        %vm1398 = vcmp.gt.f32.partialorder %v1260, 0.0
        %vm1399 = vcmp.gt.f32.partialorder %v1265, 0.0
        %vm1400 = vcmp.gt.f32.partialorder %v1268, 0.0
        %vm1401 = vcmp.gt.f32.partialorder %v1273, 0.0
        %vm1402 = vcmp.gt.f32.partialorder %v1276, 0.0
        %vm1403 = vcmp.gt.f32.partialorder %v1281, 0.0
        %vm1404 = vcmp.gt.f32.partialorder %v1284, 0.0
        %vm1405 = vcmp.gt.f32.partialorder %v1289, 0.0
        %vm1406 = vcmp.gt.f32.partialorder %v1292, 0.0
        %vm1407 = vcmp.gt.f32.partialorder %v1297, 0.0
        %vm1408 = vcmp.gt.f32.partialorder %v1300, 0.0
        %vm1409 = vcmp.gt.f32.partialorder %v1305, 0.0
        %vm1410 = vcmp.gt.f32.partialorder %v1308, 0.0
        %vm1411 = vcmp.gt.f32.partialorder %v1313, 0.0
        %vm1412 = vcmp.gt.f32.partialorder %v1316, 0.0
        %vm1413 = vcmp.gt.f32.partialorder %v1321, 0.0
        %vm1414 = vcmp.gt.f32.partialorder %v1324, 0.0
        %vm1415 = vcmp.gt.f32.partialorder %v1329, 0.0
        %vm1416 = vcmp.gt.f32.partialorder %v1332, 0.0
        %vm1417 = vcmp.gt.f32.partialorder %v1337, 0.0
        %vm1418 = vcmp.gt.f32.partialorder %v1340, 0.0
        %vm1419 = vcmp.gt.f32.partialorder %v1345, 0.0
        %vm1420 = vcmp.gt.f32.partialorder %v1348, 0.0
        %vm1421 = vcmp.gt.f32.partialorder %v1353, 0.0
        %vm1422 = vcmp.gt.f32.partialorder %v1356, 0.0
        %v1423 = vmul.f32 %v839, %v1105
        %v1424 = vmul.f32 %v839, %v1108
        %v1425 = vmul.f32 %v839, %v1113
        %v1426 = vmul.f32 %v839, %v1116
        %v1427 = vmul.f32 %v839, %v1121
        %v1428 = vmul.f32 %v839, %v1124
        %v1429 = vmul.f32 %v839, %v1129
        %v1430 = vmul.f32 %v839, %v1132
        %v1431 = vmul.f32 %v839, %v1137
        %v1432 = vmul.f32 %v839, %v1140
        %v1433 = vmul.f32 %v839, %v1145
        %v1434 = vmul.f32 %v839, %v1148
        %v1435 = vmul.f32 %v839, %v1153
        %v1436 = vmul.f32 %v839, %v1156
        %v1437 = vmul.f32 %v839, %v1161
        %v1438 = vmul.f32 %v839, %v1164
        %v1439 = vmul.f32 %v839, %v1169
        %v1440 = vmul.f32 %v839, %v1172
        %v1441 = vmul.f32 %v839, %v1177
        %v1442 = vmul.f32 %v839, %v1180
        %v1443 = vmul.f32 %v839, %v1185
        %v1444 = vmul.f32 %v839, %v1188
        %v1445 = vmul.f32 %v839, %v1193
        %v1446 = vmul.f32 %v839, %v1196
        %v1447 = vmul.f32 %v839, %v1201
        %v1448 = vmul.f32 %v839, %v1204
        %v1449 = vmul.f32 %v839, %v1209
        %v1450 = vmul.f32 %v839, %v1212
        %v1451 = vmul.f32 %v839, %v1217
        %v1452 = vmul.f32 %v839, %v1220
        %v1453 = vmul.f32 %v839, %v1225
        %v1454 = vmul.f32 %v839, %v1228
        %v1455 = vmul.f32 %v839, %v1233
        %v1456 = vmul.f32 %v839, %v1236
        %v1457 = vmul.f32 %v839, %v1241
        %v1458 = vmul.f32 %v839, %v1244
        %v1459 = vmul.f32 %v839, %v1249
        %v1460 = vmul.f32 %v839, %v1252
        %v1461 = vmul.f32 %v839, %v1257
        %v1462 = vmul.f32 %v839, %v1260
        %v1463 = vmul.f32 %v839, %v1265
        %v1464 = vmul.f32 %v839, %v1268
        %v1465 = vmul.f32 %v839, %v1273
        %v1466 = vmul.f32 %v839, %v1276
        %v1467 = vmul.f32 %v839, %v1281
        %v1468 = vmul.f32 %v839, %v1284
        %v1469 = vmul.f32 %v839, %v1289
        %v1470 = vmul.f32 %v839, %v1292
        %v1471 = vmul.f32 %v839, %v1297
        %v1472 = vmul.f32 %v839, %v1300
        %v1473 = vmul.f32 %v839, %v1305
        %v1474 = vmul.f32 %v839, %v1308
        %v1475 = vmul.f32 %v839, %v1313
        %v1476 = vmul.f32 %v839, %v1316
        %v1477 = vmul.f32 %v839, %v1321
        %v1478 = vmul.f32 %v839, %v1324
        %v1479 = vmul.f32 %v839, %v1329
        %v1480 = vmul.f32 %v839, %v1332
        %v1481 = vmul.f32 %v839, %v1337
        %v1482 = vmul.f32 %v839, %v1340
        %v1483 = vmul.f32 %v839, %v1345
        %v1484 = vmul.f32 %v839, %v1348
        %v1485 = vmul.f32 %v839, %v1353
        %v1486 = vmul.f32 %v839, %v1356
        %v1487 = vsel %vm1359, %v1105, %v1423
        %v1488 = vsel %vm1360, %v1108, %v1424
        %v1489 = vsel %vm1361, %v1113, %v1425
        %v1490 = vsel %vm1362, %v1116, %v1426
        %v1491 = vsel %vm1363, %v1121, %v1427
        %v1492 = vsel %vm1364, %v1124, %v1428
        %v1493 = vsel %vm1365, %v1129, %v1429
        %v1494 = vsel %vm1366, %v1132, %v1430
        %v1495 = vsel %vm1367, %v1137, %v1431
        %v1496 = vsel %vm1368, %v1140, %v1432
        %v1497 = vsel %vm1369, %v1145, %v1433
        %v1498 = vsel %vm1370, %v1148, %v1434
        %v1499 = vsel %vm1371, %v1153, %v1435
        %v1500 = vsel %vm1372, %v1156, %v1436
        %v1501 = vsel %vm1373, %v1161, %v1437
        %v1502 = vsel %vm1374, %v1164, %v1438
        %v1503 = vsel %vm1375, %v1169, %v1439
        %v1504 = vsel %vm1376, %v1172, %v1440
        %v1505 = vsel %vm1377, %v1177, %v1441
        %v1506 = vsel %vm1378, %v1180, %v1442
        %v1507 = vsel %vm1379, %v1185, %v1443
        %v1508 = vsel %vm1380, %v1188, %v1444
        %v1509 = vsel %vm1381, %v1193, %v1445
        %v1510 = vsel %vm1382, %v1196, %v1446
        %v1511 = vsel %vm1383, %v1201, %v1447
        %v1512 = vsel %vm1384, %v1204, %v1448
        %v1513 = vsel %vm1385, %v1209, %v1449
        %v1514 = vsel %vm1386, %v1212, %v1450
        %v1515 = vsel %vm1387, %v1217, %v1451
        %v1516 = vsel %vm1388, %v1220, %v1452
        %v1517 = vsel %vm1389, %v1225, %v1453
        %v1518 = vsel %vm1390, %v1228, %v1454
        %v1519 = vsel %vm1391, %v1233, %v1455
        %v1520 = vsel %vm1392, %v1236, %v1456
        %v1521 = vsel %vm1393, %v1241, %v1457
        %v1522 = vsel %vm1394, %v1244, %v1458
        %v1523 = vsel %vm1395, %v1249, %v1459
        %v1524 = vsel %vm1396, %v1252, %v1460
        %v1525 = vsel %vm1397, %v1257, %v1461
        %v1526 = vsel %vm1398, %v1260, %v1462
        %v1527 = vsel %vm1399, %v1265, %v1463
        %v1528 = vsel %vm1400, %v1268, %v1464
        %v1529 = vsel %vm1401, %v1273, %v1465
        %v1530 = vsel %vm1402, %v1276, %v1466
        %v1531 = vsel %vm1403, %v1281, %v1467
        %v1532 = vsel %vm1404, %v1284, %v1468
        %v1533 = vsel %vm1405, %v1289, %v1469
        %v1534 = vsel %vm1406, %v1292, %v1470
        %v1535 = vsel %vm1407, %v1297, %v1471
        %v1536 = vsel %vm1408, %v1300, %v1472
        %v1537 = vsel %vm1409, %v1305, %v1473
        %v1538 = vsel %vm1410, %v1308, %v1474
        %v1539 = vsel %vm1411, %v1313, %v1475
        %v1540 = vsel %vm1412, %v1316, %v1476
        %v1541 = vsel %vm1413, %v1321, %v1477
        %v1542 = vsel %vm1414, %v1324, %v1478
        %v1543 = vsel %vm1415, %v1329, %v1479
        %v1544 = vsel %vm1416, %v1332, %v1480
        %v1545 = vsel %vm1417, %v1337, %v1481
        %v1546 = vsel %vm1418, %v1340, %v1482
        %v1547 = vsel %vm1419, %v1345, %v1483
        %v1548 = vsel %vm1420, %v1348, %v1484
        %v1549 = vsel %vm1421, %v1353, %v1485
        %v1550 = vsel %vm1422, %v1356, %v1486
        %v1551 = vpack.c.bf16 %v1488, %v1487
        %v1552 = vpack.c.bf16 %v1490, %v1489
        %v1553 = vpack.c.bf16 %v1492, %v1491
        %v1554 = vpack.c.bf16 %v1494, %v1493
        %v1555 = vpack.c.bf16 %v1496, %v1495
        %v1556 = vpack.c.bf16 %v1498, %v1497
        %v1557 = vpack.c.bf16 %v1500, %v1499
        %v1558 = vpack.c.bf16 %v1502, %v1501
        %v1559 = vpack.c.bf16 %v1504, %v1503
        %v1560 = vpack.c.bf16 %v1506, %v1505
        %v1561 = vpack.c.bf16 %v1508, %v1507
        %v1562 = vpack.c.bf16 %v1510, %v1509
        %v1563 = vpack.c.bf16 %v1512, %v1511
        %v1564 = vpack.c.bf16 %v1514, %v1513
        %v1565 = vpack.c.bf16 %v1516, %v1515
        %v1566 = vpack.c.bf16 %v1518, %v1517
        %v1567 = vpack.c.bf16 %v1520, %v1519
        %v1568 = vpack.c.bf16 %v1522, %v1521
        %v1569 = vpack.c.bf16 %v1524, %v1523
        %v1570 = vpack.c.bf16 %v1526, %v1525
        %v1571 = vpack.c.bf16 %v1528, %v1527
        %v1572 = vpack.c.bf16 %v1530, %v1529
        %v1573 = vpack.c.bf16 %v1532, %v1531
        %v1574 = vpack.c.bf16 %v1534, %v1533
        %v1575 = vpack.c.bf16 %v1536, %v1535
        %v1576 = vpack.c.bf16 %v1538, %v1537
        %v1577 = vpack.c.bf16 %v1540, %v1539
        %v1578 = vpack.c.bf16 %v1542, %v1541
        %v1579 = vpack.c.bf16 %v1544, %v1543
        %v1580 = vpack.c.bf16 %v1546, %v1545
        %v1581 = vpack.c.bf16 %v1548, %v1547
        %v1582 = vpack.c.bf16 %v1550, %v1549
        %v1583 = vld [vmem:[%s1 + $0x50] sm:$0xf]
        %v1584 = vld [vmem:[%s1 + $0x54] sm:$0xf]
        %v1585 = vld [vmem:[%s1 + $0x58] sm:$0xf]
        %v1586 = vld [vmem:[%s1 + $0x5c] sm:$0xf]
        %v1587 = vld [vmem:[%s1 + $0x60] sm:$0xf]
        %v1588 = vld [vmem:[%s1 + $0x64] sm:$0xf]
        %v1589 = vld [vmem:[%s1 + $0x68] sm:$0xf]
        %v1590 = vld [vmem:[%s1 + $0x6c] sm:$0xf]
        %v1591 = vld [vmem:[%s1 + $0x70] sm:$0xf]
        %v1592 = vld [vmem:[%s1 + $0x74] sm:$0xf]
        %v1593 = vld [vmem:[%s1 + $0x78] sm:$0xf]
        %v1594 = vld [vmem:[%s1 + $0x7c] sm:$0xf]
        %v1595 = vld [vmem:[%s1 + $0x80] sm:$0xf]
        %v1596 = vld [vmem:[%s1 + $0x84] sm:$0xf]
        %v1597 = vld [vmem:[%s1 + $0x88] sm:$0xf]
        %v1598 = vld [vmem:[%s1 + $0x8c] sm:$0xf]
        %v1599 = vlaneseq
        %v1600 = vshrl.u32 %v1599, 7
        %v1601 = vsub.s32 0, %v1600
        %v1602 = vrot.slane %v147, %v1601
        %v1619 = vunpack.c.l.b16 %v1583
        %v1620 = vunpack.c.l.b16 %v1584
        %v1621 = vunpack.c.l.b16 %v1585
        %v1622 = vunpack.c.l.b16 %v1586
        %v1623 = vunpack.c.l.b16 %v1587
        %v1624 = vunpack.c.l.b16 %v1588
        %v1625 = vunpack.c.l.b16 %v1589
        %v1626 = vunpack.c.l.b16 %v1590
        %v1627 = vunpack.c.l.b16 %v1591
        %v1628 = vunpack.c.l.b16 %v1592
        %v1629 = vunpack.c.l.b16 %v1593
        %v1630 = vunpack.c.l.b16 %v1594
        %v1631 = vunpack.c.l.b16 %v1595
        %v1632 = vunpack.c.l.b16 %v1596
        %v1633 = vunpack.c.l.b16 %v1597
        %v1634 = vunpack.c.l.b16 %v1598
        %v1635 = vpack.c.b16 %v1620, %v1619
        %v1636 = vpack.c.b16 %v1622, %v1621
        %v1637 = vpack.c.b16 %v1624, %v1623
        %v1638 = vpack.c.b16 %v1626, %v1625
        %v1639 = vpack.c.b16 %v1628, %v1627
        %v1640 = vpack.c.b16 %v1630, %v1629
        %v1641 = vpack.c.b16 %v1632, %v1631
        %v1642 = vpack.c.b16 %v1634, %v1633
        %1651 = vmatprep.subr.bf16.mxu0 0
        %1652 = vmatpush1.bf16.msra.mxu0 %v1635
        %1653 = vmatprep.subr.bf16.mxu0 0
        %1654 = vmatpush1.bf16.msra.mxu0 %v1636
        %1655 = vmatprep.subr.bf16.mxu0 0
        %1656 = vmatpush1.bf16.msra.mxu0 %v1637
        %1657 = vmatprep.subr.bf16.mxu0 0
        %1658 = vmatpush1.bf16.msra.mxu0 %v1638
        %1659 = vmatprep.subr.bf16.mxu0 0
        %1660 = vmatpush1.bf16.msra.mxu0 %v1639
        %1661 = vmatprep.subr.bf16.mxu0 0
        %1662 = vmatpush1.bf16.msra.mxu0 %v1640
        %1663 = vmatprep.subr.bf16.mxu0 0
        %1664 = vmatpush1.bf16.msra.mxu0 %v1641
        %1665 = vmatprep.subr.bf16.mxu0 0
        %1666 = vmatpush1.bf16.msra.mxu0 %v1642
        %1667 = vmatprep.subr.bf16.mxu0 0
        %1668 = vmatpush1.bf16.msra.mxu0 0
        %1669 = vmatprep.subr.bf16.mxu0 0
        %1670 = vmatpush1.bf16.msra.mxu0 0
        %1671 = vmatprep.subr.bf16.mxu0 0
        %1672 = vmatpush1.bf16.msra.mxu0 0
        %1673 = vmatprep.subr.bf16.mxu0 0
        %1674 = vmatpush1.bf16.msra.mxu0 0
        %1675 = vmatprep.subr.bf16.mxu0 0
        %1676 = vmatpush1.bf16.msra.mxu0 0
        %1677 = vmatprep.subr.bf16.mxu0 0
        %1678 = vmatpush1.bf16.msra.mxu0 0
        %1679 = vmatprep.subr.bf16.mxu0 0
        %1680 = vmatpush1.bf16.msra.mxu0 0
        %1681 = vmatprep.subr.bf16.mxu0 0
        %1682 = vmatpush1.bf16.msra.mxu0 0
        %1683 = vmatprep.mubr.bf16.mxu0 0
        %1684 = vmatmul.mubr.bf16.gmra.mrb[0].mxu0 %v1551
        %v1685 = vpop.f32.mrb[0].mxu0
        %v1686 = vadd.f32 %v1602, %v1685
        %v1687 = vpop.f32.mrb[0].mxu0
        %v1688 = vpop.f32.mrb[0].mxu0
        %v1689 = vadd.f32 %v1602, %v1688
        %v1690 = vpop.f32.mrb[0].mxu0
        %1691 = vmatprep.mubr.bf16.mxu0 0
        %1692 = vmatmul.mubr.bf16.gmra.mrb[0].mxu0 %v1552
        %v1693 = vpop.f32.mrb[0].mxu0
        %v1694 = vadd.f32 %v1602, %v1693
        %v1695 = vpop.f32.mrb[0].mxu0
        %v1696 = vpop.f32.mrb[0].mxu0
        %v1697 = vadd.f32 %v1602, %v1696
        %v1698 = vpop.f32.mrb[0].mxu0
        %1699 = vmatprep.mubr.bf16.mxu0 0
        %1700 = vmatmul.mubr.bf16.gmra.mrb[0].mxu0 %v1553
        %v1701 = vpop.f32.mrb[0].mxu0
        %v1702 = vadd.f32 %v1602, %v1701
        %v1703 = vpop.f32.mrb[0].mxu0
        %v1704 = vpop.f32.mrb[0].mxu0
        %v1705 = vadd.f32 %v1602, %v1704
        %v1706 = vpop.f32.mrb[0].mxu0
        %1707 = vmatprep.mubr.bf16.mxu0 0
        %1708 = vmatmul.mubr.bf16.gmra.mrb[0].mxu0 %v1554
        %v1709 = vpop.f32.mrb[0].mxu0
        %v1710 = vadd.f32 %v1602, %v1709
        %v1711 = vpop.f32.mrb[0].mxu0
        %v1712 = vpop.f32.mrb[0].mxu0
        %v1713 = vadd.f32 %v1602, %v1712
        %v1714 = vpop.f32.mrb[0].mxu0
        %1715 = vmatprep.mubr.bf16.mxu0 0
        %1716 = vmatmul.mubr.bf16.gmra.mrb[0].mxu0 %v1555
        %v1717 = vpop.f32.mrb[0].mxu0
        %v1718 = vadd.f32 %v1602, %v1717
        %v1719 = vpop.f32.mrb[0].mxu0
        %v1720 = vpop.f32.mrb[0].mxu0
        %v1721 = vadd.f32 %v1602, %v1720
        %v1722 = vpop.f32.mrb[0].mxu0
        %1723 = vmatprep.mubr.bf16.mxu0 0
        %1724 = vmatmul.mubr.bf16.gmra.mrb[0].mxu0 %v1556
        %v1725 = vpop.f32.mrb[0].mxu0
        %v1726 = vadd.f32 %v1602, %v1725
        %v1727 = vpop.f32.mrb[0].mxu0
        %v1728 = vpop.f32.mrb[0].mxu0
        %v1729 = vadd.f32 %v1602, %v1728
        %v1730 = vpop.f32.mrb[0].mxu0
        %1731 = vmatprep.mubr.bf16.mxu0 0
        %1732 = vmatmul.mubr.bf16.gmra.mrb[0].mxu0 %v1557
        %v1733 = vpop.f32.mrb[0].mxu0
        %v1734 = vadd.f32 %v1602, %v1733
        %v1735 = vpop.f32.mrb[0].mxu0
        %v1736 = vpop.f32.mrb[0].mxu0
        %v1737 = vadd.f32 %v1602, %v1736
        %v1738 = vpop.f32.mrb[0].mxu0
        %1739 = vmatprep.mubr.bf16.mxu0 0
        %1740 = vmatmul.mubr.bf16.gmra.mrb[0].mxu0 %v1558
        %v1741 = vpop.f32.mrb[0].mxu0
        %v1742 = vadd.f32 %v1602, %v1741
        %v1743 = vpop.f32.mrb[0].mxu0
        %v1744 = vpop.f32.mrb[0].mxu0
        %v1745 = vadd.f32 %v1602, %v1744
        %v1746 = vpop.f32.mrb[0].mxu0
        %1747 = vmatprep.mubr.bf16.mxu0 0
        %1748 = vmatmul.mubr.bf16.gmra.mrb[0].mxu0 %v1559
        %v1749 = vpop.f32.mrb[0].mxu0
        %v1750 = vadd.f32 %v1602, %v1749
        %v1751 = vpop.f32.mrb[0].mxu0
        %v1752 = vpop.f32.mrb[0].mxu0
        %v1753 = vadd.f32 %v1602, %v1752
        %v1754 = vpop.f32.mrb[0].mxu0
        %1755 = vmatprep.mubr.bf16.mxu0 0
        %1756 = vmatmul.mubr.bf16.gmra.mrb[0].mxu0 %v1560
        %v1757 = vpop.f32.mrb[0].mxu0
        %v1758 = vadd.f32 %v1602, %v1757
        %v1759 = vpop.f32.mrb[0].mxu0
        %v1760 = vpop.f32.mrb[0].mxu0
        %v1761 = vadd.f32 %v1602, %v1760
        %v1762 = vpop.f32.mrb[0].mxu0
        %1763 = vmatprep.mubr.bf16.mxu0 0
        %1764 = vmatmul.mubr.bf16.gmra.mrb[0].mxu0 %v1561
        %v1765 = vpop.f32.mrb[0].mxu0
        %v1766 = vadd.f32 %v1602, %v1765
        %v1767 = vpop.f32.mrb[0].mxu0
        %v1768 = vpop.f32.mrb[0].mxu0
        %v1769 = vadd.f32 %v1602, %v1768
        %v1770 = vpop.f32.mrb[0].mxu0
        %1771 = vmatprep.mubr.bf16.mxu0 0
        %1772 = vmatmul.mubr.bf16.gmra.mrb[0].mxu0 %v1562
        %v1773 = vpop.f32.mrb[0].mxu0
        %v1774 = vadd.f32 %v1602, %v1773
        %v1775 = vpop.f32.mrb[0].mxu0
        %v1776 = vpop.f32.mrb[0].mxu0
        %v1777 = vadd.f32 %v1602, %v1776
        %v1778 = vpop.f32.mrb[0].mxu0
        %1779 = vmatprep.mubr.bf16.mxu0 0
        %1780 = vmatmul.mubr.bf16.gmra.mrb[0].mxu0 %v1563
        %v1781 = vpop.f32.mrb[0].mxu0
        %v1782 = vadd.f32 %v1602, %v1781
        %v1783 = vpop.f32.mrb[0].mxu0
        %v1784 = vpop.f32.mrb[0].mxu0
        %v1785 = vadd.f32 %v1602, %v1784
        %v1786 = vpop.f32.mrb[0].mxu0
        %1787 = vmatprep.mubr.bf16.mxu0 0
        %1788 = vmatmul.mubr.bf16.gmra.mrb[0].mxu0 %v1564
        %v1789 = vpop.f32.mrb[0].mxu0
        %v1790 = vadd.f32 %v1602, %v1789
        %v1791 = vpop.f32.mrb[0].mxu0
        %v1792 = vpop.f32.mrb[0].mxu0
        %v1793 = vadd.f32 %v1602, %v1792
        %v1794 = vpop.f32.mrb[0].mxu0
        %1795 = vmatprep.mubr.bf16.mxu0 0
        %1796 = vmatmul.mubr.bf16.gmra.mrb[0].mxu0 %v1565
        %v1797 = vpop.f32.mrb[0].mxu0
        %v1798 = vadd.f32 %v1602, %v1797
        %v1799 = vpop.f32.mrb[0].mxu0
        %v1800 = vpop.f32.mrb[0].mxu0
        %v1801 = vadd.f32 %v1602, %v1800
        %v1802 = vpop.f32.mrb[0].mxu0
        %1803 = vmatprep.mubr.bf16.mxu0 0
        %1804 = vmatmul.mubr.bf16.gmra.mrb[0].mxu0 %v1566
        %v1805 = vpop.f32.mrb[0].mxu0
        %v1806 = vadd.f32 %v1602, %v1805
        %v1807 = vpop.f32.mrb[0].mxu0
        %v1808 = vpop.f32.mrb[0].mxu0
        %v1809 = vadd.f32 %v1602, %v1808
        %v1810 = vpop.f32.mrb[0].mxu0
        %1811 = vmatprep.mubr.bf16.mxu0 0
        %1812 = vmatmul.mubr.bf16.gmra.mrb[0].mxu0 %v1567
        %v1813 = vpop.f32.mrb[0].mxu0
        %v1814 = vadd.f32 %v1602, %v1813
        %v1815 = vpop.f32.mrb[0].mxu0
        %v1816 = vpop.f32.mrb[0].mxu0
        %v1817 = vadd.f32 %v1602, %v1816
        %v1818 = vpop.f32.mrb[0].mxu0
        %1819 = vmatprep.mubr.bf16.mxu0 0
        %1820 = vmatmul.mubr.bf16.gmra.mrb[0].mxu0 %v1568
        %v1821 = vpop.f32.mrb[0].mxu0
        %v1822 = vadd.f32 %v1602, %v1821
        %v1823 = vpop.f32.mrb[0].mxu0
        %v1824 = vpop.f32.mrb[0].mxu0
        %v1825 = vadd.f32 %v1602, %v1824
        %v1826 = vpop.f32.mrb[0].mxu0
        %1827 = vmatprep.mubr.bf16.mxu0 0
        %1828 = vmatmul.mubr.bf16.gmra.mrb[0].mxu0 %v1569
        %v1829 = vpop.f32.mrb[0].mxu0
        %v1830 = vadd.f32 %v1602, %v1829
        %v1831 = vpop.f32.mrb[0].mxu0
        %v1832 = vpop.f32.mrb[0].mxu0
        %v1833 = vadd.f32 %v1602, %v1832
        %v1834 = vpop.f32.mrb[0].mxu0
        %1835 = vmatprep.mubr.bf16.mxu0 0
        %1836 = vmatmul.mubr.bf16.gmra.mrb[0].mxu0 %v1570
        %v1837 = vpop.f32.mrb[0].mxu0
        %v1838 = vadd.f32 %v1602, %v1837
        %v1839 = vpop.f32.mrb[0].mxu0
        %v1840 = vpop.f32.mrb[0].mxu0
        %v1841 = vadd.f32 %v1602, %v1840
        %v1842 = vpop.f32.mrb[0].mxu0
        %1843 = vmatprep.mubr.bf16.mxu0 0
        %1844 = vmatmul.mubr.bf16.gmra.mrb[0].mxu0 %v1571
        %v1845 = vpop.f32.mrb[0].mxu0
        %v1846 = vadd.f32 %v1602, %v1845
        %v1847 = vpop.f32.mrb[0].mxu0
        %v1848 = vpop.f32.mrb[0].mxu0
        %v1849 = vadd.f32 %v1602, %v1848
        %v1850 = vpop.f32.mrb[0].mxu0
        %1851 = vmatprep.mubr.bf16.mxu0 0
        %1852 = vmatmul.mubr.bf16.gmra.mrb[0].mxu0 %v1572
        %v1853 = vpop.f32.mrb[0].mxu0
        %v1854 = vadd.f32 %v1602, %v1853
        %v1855 = vpop.f32.mrb[0].mxu0
        %v1856 = vpop.f32.mrb[0].mxu0
        %v1857 = vadd.f32 %v1602, %v1856
        %v1858 = vpop.f32.mrb[0].mxu0
        %1859 = vmatprep.mubr.bf16.mxu0 0
        %1860 = vmatmul.mubr.bf16.gmra.mrb[0].mxu0 %v1573
        %v1861 = vpop.f32.mrb[0].mxu0
        %v1862 = vadd.f32 %v1602, %v1861
        %v1863 = vpop.f32.mrb[0].mxu0
        %v1864 = vpop.f32.mrb[0].mxu0
        %v1865 = vadd.f32 %v1602, %v1864
        %v1866 = vpop.f32.mrb[0].mxu0
        %1867 = vmatprep.mubr.bf16.mxu0 0
        %1868 = vmatmul.mubr.bf16.gmra.mrb[0].mxu0 %v1574
        %v1869 = vpop.f32.mrb[0].mxu0
        %v1870 = vadd.f32 %v1602, %v1869
        %v1871 = vpop.f32.mrb[0].mxu0
        %v1872 = vpop.f32.mrb[0].mxu0
        %v1873 = vadd.f32 %v1602, %v1872
        %v1874 = vpop.f32.mrb[0].mxu0
        %1875 = vmatprep.mubr.bf16.mxu0 0
        %1876 = vmatmul.mubr.bf16.gmra.mrb[0].mxu0 %v1575
        %v1877 = vpop.f32.mrb[0].mxu0
        %v1878 = vadd.f32 %v1602, %v1877
        %v1879 = vpop.f32.mrb[0].mxu0
        %v1880 = vpop.f32.mrb[0].mxu0
        %v1881 = vadd.f32 %v1602, %v1880
        %v1882 = vpop.f32.mrb[0].mxu0
        %1883 = vmatprep.mubr.bf16.mxu0 0
        %1884 = vmatmul.mubr.bf16.gmra.mrb[0].mxu0 %v1576
        %v1885 = vpop.f32.mrb[0].mxu0
        %v1886 = vadd.f32 %v1602, %v1885
        %v1887 = vpop.f32.mrb[0].mxu0
        %v1888 = vpop.f32.mrb[0].mxu0
        %v1889 = vadd.f32 %v1602, %v1888
        %v1890 = vpop.f32.mrb[0].mxu0
        %1891 = vmatprep.mubr.bf16.mxu0 0
        %1892 = vmatmul.mubr.bf16.gmra.mrb[0].mxu0 %v1577
        %v1893 = vpop.f32.mrb[0].mxu0
        %v1894 = vadd.f32 %v1602, %v1893
        %v1895 = vpop.f32.mrb[0].mxu0
        %v1896 = vpop.f32.mrb[0].mxu0
        %v1897 = vadd.f32 %v1602, %v1896
        %v1898 = vpop.f32.mrb[0].mxu0
        %1899 = vmatprep.mubr.bf16.mxu0 0
        %1900 = vmatmul.mubr.bf16.gmra.mrb[0].mxu0 %v1578
        %v1901 = vpop.f32.mrb[0].mxu0
        %v1902 = vadd.f32 %v1602, %v1901
        %v1903 = vpop.f32.mrb[0].mxu0
        %v1904 = vpop.f32.mrb[0].mxu0
        %v1905 = vadd.f32 %v1602, %v1904
        %v1906 = vpop.f32.mrb[0].mxu0
        %1907 = vmatprep.mubr.bf16.mxu0 0
        %1908 = vmatmul.mubr.bf16.gmra.mrb[0].mxu0 %v1579
        %v1909 = vpop.f32.mrb[0].mxu0
        %v1910 = vadd.f32 %v1602, %v1909
        %v1911 = vpop.f32.mrb[0].mxu0
        %v1912 = vpop.f32.mrb[0].mxu0
        %v1913 = vadd.f32 %v1602, %v1912
        %v1914 = vpop.f32.mrb[0].mxu0
        %1915 = vmatprep.mubr.bf16.mxu0 0
        %1916 = vmatmul.mubr.bf16.gmra.mrb[0].mxu0 %v1580
        %v1917 = vpop.f32.mrb[0].mxu0
        %v1918 = vadd.f32 %v1602, %v1917
        %v1919 = vpop.f32.mrb[0].mxu0
        %v1920 = vpop.f32.mrb[0].mxu0
        %v1921 = vadd.f32 %v1602, %v1920
        %v1922 = vpop.f32.mrb[0].mxu0
        %1923 = vmatprep.mubr.bf16.mxu0 0
        %1924 = vmatmul.mubr.bf16.gmra.mrb[0].mxu0 %v1581
        %v1925 = vpop.f32.mrb[0].mxu0
        %v1926 = vadd.f32 %v1602, %v1925
        %v1927 = vpop.f32.mrb[0].mxu0
        %v1928 = vpop.f32.mrb[0].mxu0
        %v1929 = vadd.f32 %v1602, %v1928
        %v1930 = vpop.f32.mrb[0].mxu0
        %1931 = vmatprep.mubr.bf16.mxu0 0
        %1932 = vmatmul.mubr.bf16.gmra.mrb[0].mxu0 %v1582
        %v1933 = vpop.f32.mrb[0].mxu0
        %v1934 = vadd.f32 %v1602, %v1933
        %v1935 = vpop.f32.mrb[0].mxu0
        %v1936 = vpop.f32.mrb[0].mxu0
        %v1937 = vadd.f32 %v1602, %v1936
        %v1938 = vpop.f32.mrb[0].mxu0
        %1939 = vdwg.mxu0
        %1940 = vst [vmem:[%s137] sm:$0xff] %v1686
        %1941 = vst [vmem:[%s137 + $0x8] sm:$0xff] %v1689
        %1942 = vst [vmem:[%s137 + $0x10] sm:$0xff] %v1694
        %1943 = vst [vmem:[%s137 + $0x18] sm:$0xff] %v1697
        %1944 = vst [vmem:[%s137 + $0x20] sm:$0xff] %v1702
        %1945 = vst [vmem:[%s137 + $0x28] sm:$0xff] %v1705
        %1946 = vst [vmem:[%s137 + $0x30] sm:$0xff] %v1710
        %1947 = vst [vmem:[%s137 + $0x38] sm:$0xff] %v1713
        %1948 = vst [vmem:[%s137 + $0x40] sm:$0xff] %v1718
        %1949 = vst [vmem:[%s137 + $0x48] sm:$0xff] %v1721
        %1950 = vst [vmem:[%s137 + $0x50] sm:$0xff] %v1726
        %1951 = vst [vmem:[%s137 + $0x58] sm:$0xff] %v1729
        %1952 = vst [vmem:[%s137 + $0x60] sm:$0xff] %v1734
        %1953 = vst [vmem:[%s137 + $0x68] sm:$0xff] %v1737
        %1954 = vst [vmem:[%s137 + $0x70] sm:$0xff] %v1742
        %1955 = vst [vmem:[%s137 + $0x78] sm:$0xff] %v1745
        %1956 = vst [vmem:[%s137 + $0x80] sm:$0xff] %v1750
        %1957 = vst [vmem:[%s137 + $0x88] sm:$0xff] %v1753
        %1958 = vst [vmem:[%s137 + $0x90] sm:$0xff] %v1758
        %1959 = vst [vmem:[%s137 + $0x98] sm:$0xff] %v1761
        %1960 = vst [vmem:[%s137 + $0xa0] sm:$0xff] %v1766
        %1961 = vst [vmem:[%s137 + $0xa8] sm:$0xff] %v1769
        %1962 = vst [vmem:[%s137 + $0xb0] sm:$0xff] %v1774
        %1963 = vst [vmem:[%s137 + $0xb8] sm:$0xff] %v1777
        %1964 = vst [vmem:[%s137 + $0xc0] sm:$0xff] %v1782
        %1965 = vst [vmem:[%s137 + $0xc8] sm:$0xff] %v1785
        %1966 = vst [vmem:[%s137 + $0xd0] sm:$0xff] %v1790
        %1967 = vst [vmem:[%s137 + $0xd8] sm:$0xff] %v1793
        %1968 = vst [vmem:[%s137 + $0xe0] sm:$0xff] %v1798
        %1969 = vst [vmem:[%s137 + $0xe8] sm:$0xff] %v1801
        %1970 = vst [vmem:[%s137 + $0xf0] sm:$0xff] %v1806
        %1971 = vst [vmem:[%s137 + $0xf8] sm:$0xff] %v1809
        %1972 = vst [vmem:[%s137 + $0x100] sm:$0xff] %v1814
        %1973 = vst [vmem:[%s137 + $0x108] sm:$0xff] %v1817
        %1974 = vst [vmem:[%s137 + $0x110] sm:$0xff] %v1822
        %1975 = vst [vmem:[%s137 + $0x118] sm:$0xff] %v1825
        %1976 = vst [vmem:[%s137 + $0x120] sm:$0xff] %v1830
        %1977 = vst [vmem:[%s137 + $0x128] sm:$0xff] %v1833
        %1978 = vst [vmem:[%s137 + $0x130] sm:$0xff] %v1838
        %1979 = vst [vmem:[%s137 + $0x138] sm:$0xff] %v1841
        %1980 = vst [vmem:[%s137 + $0x140] sm:$0xff] %v1846
        %1981 = vst [vmem:[%s137 + $0x148] sm:$0xff] %v1849
        %1982 = vst [vmem:[%s137 + $0x150] sm:$0xff] %v1854
        %1983 = vst [vmem:[%s137 + $0x158] sm:$0xff] %v1857
        %1984 = vst [vmem:[%s137 + $0x160] sm:$0xff] %v1862
        %1985 = vst [vmem:[%s137 + $0x168] sm:$0xff] %v1865
        %1986 = vst [vmem:[%s137 + $0x170] sm:$0xff] %v1870
        %1987 = vst [vmem:[%s137 + $0x178] sm:$0xff] %v1873
        %1988 = vst [vmem:[%s137 + $0x180] sm:$0xff] %v1878
        %1989 = vst [vmem:[%s137 + $0x188] sm:$0xff] %v1881
        %1990 = vst [vmem:[%s137 + $0x190] sm:$0xff] %v1886
        %1991 = vst [vmem:[%s137 + $0x198] sm:$0xff] %v1889
        %1992 = vst [vmem:[%s137 + $0x1a0] sm:$0xff] %v1894
        %1993 = vst [vmem:[%s137 + $0x1a8] sm:$0xff] %v1897
        %1994 = vst [vmem:[%s137 + $0x1b0] sm:$0xff] %v1902
        %1995 = vst [vmem:[%s137 + $0x1b8] sm:$0xff] %v1905
        %1996 = vst [vmem:[%s137 + $0x1c0] sm:$0xff] %v1910
        %1997 = vst [vmem:[%s137 + $0x1c8] sm:$0xff] %v1913
        %1998 = vst [vmem:[%s137 + $0x1d0] sm:$0xff] %v1918
        %1999 = vst [vmem:[%s137 + $0x1d8] sm:$0xff] %v1921
        %2000 = vst [vmem:[%s137 + $0x1e0] sm:$0xff] %v1926
        %2001 = vst [vmem:[%s137 + $0x1e8] sm:$0xff] %v1929
        %2002 = vst [vmem:[%s137 + $0x1f0] sm:$0xff] %v1934
        %2003 = vst [vmem:[%s137 + $0x1f8] sm:$0xff] %v1937
        %s2004 = sand.u32 %s71, 1
        %s2005 = scalar_lea.sflag [#allocation3], %s2004
        %s2006 = sand.u32 %s71, 1
        %s2007 = smul.addr %s2006, 512
        %s2008 = scalar_lea.vmem [#allocation2], %s2007
        // Predicated region
        $region29: #{tpu_custom_call.1} parent=27 // pred_check
          %p2009 = pneg %p81
        $region30: #{tpu_custom_call.1} parent=27 // pred_check_branch
          %2011 = sbr.rel (%p2009) target = $region32
        $region31: #{tpu_custom_call.1} parent=27 // pred_region
          %s2012 = smul.u32 64, %s16
          %s2014 = ssub.s32 8192, 8192
          %2015 = vsyncadd %s2005, %s2014
          %s2016 = smul.addr %s2012, 128
          %s2017 = scalar_lea.hbm %s2, %s2016
          %s2018 = sshll.u32 %s2008, 4
          %s2019 = int_to_ptr.vmem [resolvable:$true] %s2018
          %2024 = dma.vmem_to_hbm [thread:$0]  %s2019, 8192, %s2017, %s2005, 128, 128, 8
        $region32: #{tpu_custom_call.1} parent=27 // pred_fallthru
          _
      $region28: #{tpu_custom_call.1} parent=5 // pred_fallthru
        _
      %p2025 = scmp.le.s32.totalorder 2, %s11
      // Predicated region
      $region33: #{tpu_custom_call.1} parent=5 // pred_check
        %p2026 = pneg %p2025
      $region34: #{tpu_custom_call.1} parent=5 // pred_check_branch
        %2028 = sbr.rel (%p2026) target = $region36
      $region35: #{tpu_custom_call.1} parent=5 // pred_region
        %s2029 = ssub.s32 %s11, 2
        // Predicated region
        $region37: #{tpu_custom_call.1} parent=35 // pred_check
          %p2030 = pneg %p87
        $region38: #{tpu_custom_call.1} parent=35 // pred_check_branch
          %2032 = sbr.rel (%p2030) target = $region40
        $region39: #{tpu_custom_call.1} parent=35 // pred_region
          %s2033 = sand.u32 %s72, 1
          %s2034 = scalar_lea.sflag [#allocation3], %s2033
          %s2035 = sand.u32 %s72, 1
          %s2036 = smul.addr %s2035, 512
          %s2037 = scalar_lea.vmem [#allocation2], %s2036
          %2038 = dma.done %s2034, 8192
        $region40: #{tpu_custom_call.1} parent=35 // pred_fallthru
          _
      $region36: #{tpu_custom_call.1} parent=5 // pred_fallthru
        _
    $region6: #{tpu_custom_call.1} parent=1 // loop_footer
      %s15 = sadd.s32 1, %s11
    $region7: #{tpu_custom_call.1} parent=1 // loop_footer_branch
      %10 = sbr.rel target = $region3
    $region8: #{tpu_custom_call.1} parent=1 // loop_exit
      _
    %2039 = vsyncpa [#allocation3], 1
    %s2040 = scalar_lea.sflag [#allocation3], 1
    %2041 = vsyncpa %s2040, 1

</llo_original>
